<compile_context>
chip_gen: v7x
topology: tpu7x:2x2x1
jax: 0.10.0
libtpu: 0.0.40
codegen_flags: <defaults>
</compile_context>

<pallas_src>
import math

import jax
import jax.numpy as jnp
from jax.experimental import pallas as pl
from jax.experimental.pallas import tpu as pltpu

# Scaled-down CLIP text config (real clip-vit-base-patch32 text model:
# D=512, H=8, F=2048, L=12, vocab=49408, max_pos=77).
D = 128            # hidden size
H = 4              # attention heads
HD = D // H        # head dim
F = 4 * D          # MLP intermediate size
NUM_LAYERS = 3     # total layers; forward returns output of layer NUM_LAYERS-1
VOCAB = 64
MAX_POS = 16
EPS = 1e-5         # CLIP layer_norm_eps
NEG = -1e9         # large-negative additive mask (finite, like HF's dtype-min)


def clip_stack_kernel(x_ref, bias_ref,
                      ln1_w_ref, ln1_b_ref,
                      wqkv_ref, bqkv_ref, wo_ref, bo_ref,
                      ln2_w_ref, ln2_b_ref,
                      w1_ref, b1_ref, w2_ref, b2_ref,
                      out_ref, x_scratch):
    """(L-1) fused pre-LN CLIP encoder blocks for one batch element.

    grid = (batch, layer); the residual stream lives in x_scratch (VMEM)
    across the layer axis, out_ref is written only on the last layer.
    """
    l = pl.program_id(1)

    @pl.when(l == 0)
    def _():
        x_scratch[...] = x_ref[0]

    x = x_scratch[...]                       # (S, D) f32 residual stream
    bias = bias_ref[0]                       # (S, S) f32 causal+padding bias
    scale = 1.0 / math.sqrt(HD)              # CLIP scales q by head_dim**-0.5

    # ---- LayerNorm 1 (f32) ----
    mu = jnp.mean(x, axis=-1, keepdims=True)
    var = jnp.mean((x - mu) ** 2, axis=-1, keepdims=True)
    xn = (x - mu) * jax.lax.rsqrt(var + EPS) * ln1_w_ref[0] + ln1_b_ref[0]

    # ---- fused QKV projection: one wide, lane-dense MXU push ----
    qkv = jnp.dot(xn.astype(jnp.bfloat16), wqkv_ref[0],
                  preferred_element_type=jnp.float32) + bqkv_ref[0]   # (S, 3D)
    q = qkv[:, 0:D] * scale
    k = qkv[:, D:2 * D]
    v = qkv[:, 2 * D:3 * D].astype(jnp.bfloat16)

    # ---- per-head attention (static unroll; lane slices are static) ----
    ctx_heads = []
    for h in range(H):
        sl = slice(h * HD, (h + 1) * HD)
        scores = jax.lax.dot_general(
            q[:, sl], k[:, sl], (((1,), (1,)), ((), ())),
            preferred_element_type=jnp.float32) + bias                # (S, S)
        scores = scores - jnp.max(scores, axis=-1, keepdims=True)
        p = jnp.exp(scores)
        p = p * pl.reciprocal(jnp.sum(p, axis=-1, keepdims=True), approx=True)
        ctx_heads.append(jnp.dot(p.astype(jnp.bfloat16), v[:, sl],
                                 preferred_element_type=jnp.float32))  # (S, HD)
    ctx = jnp.concatenate(ctx_heads, axis=-1)                          # (S, D)

    # ---- fused output projection (K = D) + residual 1 ----
    attn = jnp.dot(ctx.astype(jnp.bfloat16), wo_ref[0],
                   preferred_element_type=jnp.float32) + bo_ref[0]
    x = x + attn

    # ---- LayerNorm 2 + MLP (quick_gelu, CLIP default) + residual 2 ----
    mu2 = jnp.mean(x, axis=-1, keepdims=True)
    var2 = jnp.mean((x - mu2) ** 2, axis=-1, keepdims=True)
    xn2 = (x - mu2) * jax.lax.rsqrt(var2 + EPS) * ln2_w_ref[0] + ln2_b_ref[0]
    h1 = jnp.dot(xn2.astype(jnp.bfloat16), w1_ref[0],
                 preferred_element_type=jnp.float32) + b1_ref[0]       # (S, F)
    g = h1 * (1.0 / (1.0 + jnp.exp(-1.702 * h1)))                      # quick_gelu
    h2 = jnp.dot(g.astype(jnp.bfloat16), w2_ref[0],
                 preferred_element_type=jnp.float32) + b2_ref[0]
    x_out = x + h2

    x_scratch[...] = x_out                   # keep residual stream resident

    @pl.when(l == pl.num_programs(1) - 1)
    def _():
        out_ref[0] = x_out


def clip_encoder_stack(x, bias, stacked):
    """Run the first (NUM_LAYERS-1) encoder blocks in a single pallas_call."""
    B, S, Dm = x.shape
    NL = stacked["wqkv"].shape[0]

    w_spec = lambda shape: pl.BlockSpec((1,) + shape, lambda b, l: (l, 0, 0))
    in_specs = [
        pl.BlockSpec((1, S, Dm), lambda b, l: (b, 0, 0)),   # x (read at l==0)
        pl.BlockSpec((1, S, S), lambda b, l: (b, 0, 0)),    # attention bias
        w_spec((1, Dm)), w_spec((1, Dm)),                   # ln1 w, b
        w_spec((Dm, 3 * Dm)), w_spec((1, 3 * Dm)),          # fused wqkv, bqkv
        w_spec((Dm, Dm)), w_spec((1, Dm)),                  # wo, bo
        w_spec((1, Dm)), w_spec((1, Dm)),                   # ln2 w, b
        w_spec((Dm, F)), w_spec((1, F)),                    # fc1
        w_spec((F, Dm)), w_spec((1, Dm)),                   # fc2
    ]
    return pl.pallas_call(
        clip_stack_kernel,
        out_shape=jax.ShapeDtypeStruct((B, S, Dm), jnp.float32),
        grid_spec=pltpu.PrefetchScalarGridSpec(
            num_scalar_prefetch=0,
            grid=(B, NL),
            in_specs=in_specs,
            out_specs=pl.BlockSpec((1, S, Dm), lambda b, l: (b, 0, 0)),
            scratch_shapes=[pltpu.VMEM((S, Dm), jnp.float32)],
        ),
        compiler_params=pltpu.CompilerParams(
            dimension_semantics=("parallel", "arbitrary")),
    )(x, bias,
      stacked["ln1_w"], stacked["ln1_b"],
      stacked["wqkv"], stacked["bqkv"], stacked["wo"], stacked["bo"],
      stacked["ln2_w"], stacked["ln2_b"],
      stacked["w1"], stacked["b1"], stacked["w2"], stacked["b2"])


def init_params(key):
    """Deterministic synthetic weights with CLIP-text-encoder shapes (scaled).

    Matmul weights are stored in bfloat16 (native MXU dtype, half the HBM
    weight traffic); LayerNorm params and biases stay f32.
    """
    keys = jax.random.split(key, 2 + NUM_LAYERS)

    def dense(k, shape, dtype=jnp.float32):
        return (0.02 * jax.random.normal(k, shape, jnp.float32)).astype(dtype)

    params = {
        "tok_emb": dense(keys[0], (VOCAB, D)),
        "pos_emb": dense(keys[1], (MAX_POS, D)),
        "layers": [],
    }
    for li in range(NUM_LAYERS):
        ks = jax.random.split(keys[2 + li], 4)
        params["layers"].append({
            "ln1_w": jnp.ones((1, D), jnp.float32),
            "ln1_b": jnp.zeros((1, D), jnp.float32),
            "wqkv": dense(ks[0], (D, 3 * D), jnp.bfloat16),   # fused Q|K|V
            "bqkv": jnp.zeros((1, 3 * D), jnp.float32),
            "wo": dense(ks[1], (D, D), jnp.bfloat16),
            "bo": jnp.zeros((1, D), jnp.float32),
            "ln2_w": jnp.ones((1, D), jnp.float32),
            "ln2_b": jnp.zeros((1, D), jnp.float32),
            "w1": dense(ks[2], (D, F), jnp.bfloat16),
            "b1": jnp.zeros((1, F), jnp.float32),
            "w2": dense(ks[3], (F, D), jnp.bfloat16),
            "b2": jnp.zeros((1, D), jnp.float32),
        })
    return params


def text_embedder_forward(params, input_ids, attention_mask):
    """Equivalent of TextEmbedder.forward: returns hidden_states[-2].

    hidden_states[-2] of an L-layer CLIP text encoder is the activation after
    the first (L-1) blocks, with NO final layer norm applied.
    """
    B, S = input_ids.shape
    # Token + position embeddings (gather = plain-JAX glue; not the hot path).
    x = (params["tok_emb"][input_ids] + params["pos_emb"][None, :S, :]
         ).astype(jnp.float32)

    # Precompute causal + padding additive bias once (hoisted out of kernel).
    q_idx = jnp.arange(S, dtype=jnp.int32)[:, None]
    k_idx = jnp.arange(S, dtype=jnp.int32)[None, :]
    causal = jnp.where(k_idx <= q_idx, 0.0, NEG)                 # (S, S)
    pad = jnp.where(attention_mask[:, None, :] > 0, 0.0, NEG)    # (B, 1, S)
    bias = jnp.maximum(causal[None, :, :] + pad, NEG).astype(jnp.float32)

    # Stack the first (L-1) layers' weights with a leading layer axis.
    NL = NUM_LAYERS - 1
    layers = params["layers"][:NL]
    stacked = {name: jnp.stack([lp[name] for lp in layers], axis=0)
               for name in layers[0]}

    return clip_encoder_stack(x, bias, stacked)


if __name__ == "__main__":
    key = jax.random.PRNGKey(0)
    pkey, ikey = jax.random.split(key)
    params = init_params(pkey)

    B, S = 2, 8
    input_ids = jax.random.randint(ikey, (B, S), 0, VOCAB, dtype=jnp.int32)
    # CLIP-style padding mask (BOS/real tokens = 1, padding = 0).
    attention_mask = jnp.array([[1, 1, 1, 1, 1, 1, 1, 1],
                                [1, 1, 1, 1, 1, 0, 0, 0]], dtype=jnp.int32)

    out = text_embedder_forward(params, input_ids, attention_mask)
    jax.block_until_ready(out)
    assert out.shape == (B, S, D) and out.dtype == jnp.float32
    assert bool(jnp.all(jnp.isfinite(out)))
    print("KERNEL_OK")
</pallas_src>

<mosaic_0001>
module attributes {stable_mosaic.version = 11 : i64} {
  func.func @clip_stack_kernel(%arg0: i32, %arg1: i32, %arg2: memref<1x8x128xf32, #tpu.memory_space<vmem>>, %arg3: memref<1x8x8xf32, #tpu.memory_space<vmem>>, %arg4: memref<1x1x128xf32, #tpu.memory_space<vmem>>, %arg5: memref<1x1x128xf32, #tpu.memory_space<vmem>>, %arg6: memref<1x128x384xbf16, #tpu.memory_space<vmem>>, %arg7: memref<1x1x384xf32, #tpu.memory_space<vmem>>, %arg8: memref<1x128x128xbf16, #tpu.memory_space<vmem>>, %arg9: memref<1x1x128xf32, #tpu.memory_space<vmem>>, %arg10: memref<1x1x128xf32, #tpu.memory_space<vmem>>, %arg11: memref<1x1x128xf32, #tpu.memory_space<vmem>>, %arg12: memref<1x128x512xbf16, #tpu.memory_space<vmem>>, %arg13: memref<1x1x512xf32, #tpu.memory_space<vmem>>, %arg14: memref<1x512x128xbf16, #tpu.memory_space<vmem>>, %arg15: memref<1x1x128xf32, #tpu.memory_space<vmem>>, %arg16: memref<1x8x128xf32, #tpu.memory_space<vmem>>, %arg17: memref<8x128xf32, #tpu.memory_space<vmem>>) attributes {dimension_semantics = [#tpu.dimension_semantics<parallel>, #tpu.dimension_semantics<arbitrary>], iteration_bounds = array<i64: 2, 2>, scalar_prefetch = 0 : i64, scratch_operands = 1 : i64, tpu.core_type = #tpu.core_type<tc>, window_params = [{transform_indices = @transform_0, window_bounds = array<i64: 1, 8, 128>}, {transform_indices = @transform_1, window_bounds = array<i64: 1, 8, 8>}, {transform_indices = @transform_2, window_bounds = array<i64: 1, 1, 128>}, {transform_indices = @transform_3, window_bounds = array<i64: 1, 1, 128>}, {transform_indices = @transform_4, window_bounds = array<i64: 1, 128, 384>}, {transform_indices = @transform_5, window_bounds = array<i64: 1, 1, 384>}, {transform_indices = @transform_6, window_bounds = array<i64: 1, 128, 128>}, {transform_indices = @transform_7, window_bounds = array<i64: 1, 1, 128>}, {transform_indices = @transform_8, window_bounds = array<i64: 1, 1, 128>}, {transform_indices = @transform_9, window_bounds = array<i64: 1, 1, 128>}, {transform_indices = @transform_10, window_bounds = array<i64: 1, 128, 512>}, {transform_indices = @transform_11, window_bounds = array<i64: 1, 1, 512>}, {transform_indices = @transform_12, window_bounds = array<i64: 1, 512, 128>}, {transform_indices = @transform_13, window_bounds = array<i64: 1, 1, 128>}, {transform_indices = @transform_14, window_bounds = array<i64: 1, 8, 128>}]} {
    %c0_i32 = arith.constant 0 : i32
    %0 = arith.cmpi eq, %arg1, %c0_i32 : i32
    %1 = arith.extui %0 : i1 to i32
    %c0_i32_0 = arith.constant 0 : i32
    %2 = arith.cmpi ne, %1, %c0_i32_0 : i32
    scf.if %2 {
      %c0_77 = arith.constant 0 : index
      %c0_78 = arith.constant 0 : index
      %c0_79 = arith.constant 0 : index
      %179 = vector.load %arg2[%c0_77, %c0_78, %c0_79] : memref<1x8x128xf32, #tpu.memory_space<vmem>>, vector<1x8x128xf32>
      %180 = vector.shape_cast %179 : vector<1x8x128xf32> to vector<8x128xf32>
      %c0_80 = arith.constant 0 : index
      %c0_81 = arith.constant 0 : index
      %181 = vector.load %arg17[%c0_80, %c0_81] : memref<8x128xf32, #tpu.memory_space<vmem>>, vector<8x128xf32>
      tpu.vector_store %arg17[%c0_80, %c0_81], %180 {strides = array<i32>} : memref<8x128xf32, #tpu.memory_space<vmem>>, vector<8x128xf32>,
    } else {
    }
    %c0 = arith.constant 0 : index
    %c0_1 = arith.constant 0 : index
    %3 = vector.load %arg17[%c0, %c0_1] : memref<8x128xf32, #tpu.memory_space<vmem>>, vector<8x128xf32>
    %c0_2 = arith.constant 0 : index
    %c0_3 = arith.constant 0 : index
    %c0_4 = arith.constant 0 : index
    %4 = vector.load %arg3[%c0_2, %c0_3, %c0_4] : memref<1x8x8xf32, #tpu.memory_space<vmem>>, vector<1x8x8xf32>
    %5 = vector.shape_cast %4 : vector<1x8x8xf32> to vector<8x8xf32>
    %cst = arith.constant dense<0.000000e+00> : vector<8xf32>
    %6 = vector.multi_reduction <add>, %3, %cst [1] : vector<8x128xf32> to vector<8xf32>
    %7 = vector.shape_cast %6 : vector<8xf32> to vector<8x1xf32>
    %cst_5 = arith.constant 1.280000e+02 : f32
    %8 = vector.broadcast %cst_5 : f32 to vector<8x1xf32>
    %9 = arith.divf %7, %8 : vector<8x1xf32>
    %10 = vector.broadcast %9 : vector<8x1xf32> to vector<8x128xf32>
    %11 = arith.subf %3, %10 : vector<8x128xf32>
    %12 = arith.mulf %11, %11 : vector<8x128xf32>
    %cst_6 = arith.constant dense<0.000000e+00> : vector<8xf32>
    %13 = vector.multi_reduction <add>, %12, %cst_6 [1] : vector<8x128xf32> to vector<8xf32>
    %14 = vector.shape_cast %13 : vector<8xf32> to vector<8x1xf32>
    %cst_7 = arith.constant 1.280000e+02 : f32
    %15 = vector.broadcast %cst_7 : f32 to vector<8x1xf32>
    %16 = arith.divf %14, %15 : vector<8x1xf32>
    %17 = vector.broadcast %9 : vector<8x1xf32> to vector<8x128xf32>
    %18 = arith.subf %3, %17 : vector<8x128xf32>
    %cst_8 = arith.constant 9.99999974E-6 : f32
    %19 = vector.broadcast %cst_8 : f32 to vector<8x1xf32>
    %20 = arith.addf %16, %19 : vector<8x1xf32>
    %21 = math.rsqrt %20 : vector<8x1xf32>
    %22 = vector.broadcast %21 : vector<8x1xf32> to vector<8x128xf32>
    %23 = arith.mulf %18, %22 : vector<8x128xf32>
    %c0_9 = arith.constant 0 : index
    %c0_10 = arith.constant 0 : index
    %c0_11 = arith.constant 0 : index
    %24 = vector.load %arg4[%c0_9, %c0_10, %c0_11] : memref<1x1x128xf32, #tpu.memory_space<vmem>>, vector<1x1x128xf32>
    %25 = vector.shape_cast %24 : vector<1x1x128xf32> to vector<1x128xf32>
    %26 = vector.broadcast %25 : vector<1x128xf32> to vector<8x128xf32>
    %27 = arith.mulf %23, %26 : vector<8x128xf32>
    %c0_12 = arith.constant 0 : index
    %c0_13 = arith.constant 0 : index
    %c0_14 = arith.constant 0 : index
    %28 = vector.load %arg5[%c0_12, %c0_13, %c0_14] : memref<1x1x128xf32, #tpu.memory_space<vmem>>, vector<1x1x128xf32>
    %29 = vector.shape_cast %28 : vector<1x1x128xf32> to vector<1x128xf32>
    %30 = vector.broadcast %29 : vector<1x128xf32> to vector<8x128xf32>
    %31 = arith.addf %27, %30 : vector<8x128xf32>
    %32 = arith.truncf %31 : vector<8x128xf32> to vector<8x128xbf16>
    %c0_15 = arith.constant 0 : index
    %c0_16 = arith.constant 0 : index
    %c0_17 = arith.constant 0 : index
    %33 = vector.load %arg6[%c0_15, %c0_16, %c0_17] : memref<1x128x384xbf16, #tpu.memory_space<vmem>>, vector<1x128x384xbf16>
    %34 = vector.shape_cast %33 : vector<1x128x384xbf16> to vector<128x384xbf16>
    %cst_18 = arith.constant dense<0.000000e+00> : vector<8x384xf32>
    %35 = tpu.matmul %32, %34, %cst_18 {dimension_numbers = #tpu.dot_dimension_numbers<[1], [0], [0], [1], [0, 0, 1, 1], [], []>} : vector<8x128xbf16>, vector<128x384xbf16>, vector<8x384xf32> -> vector<8x384xf32>
    %c0_19 = arith.constant 0 : index
    %c0_20 = arith.constant 0 : index
    %c0_21 = arith.constant 0 : index
    %36 = vector.load %arg7[%c0_19, %c0_20, %c0_21] : memref<1x1x384xf32, #tpu.memory_space<vmem>>, vector<1x1x384xf32>
    %37 = vector.shape_cast %36 : vector<1x1x384xf32> to vector<1x384xf32>
    %38 = vector.broadcast %37 : vector<1x384xf32> to vector<8x384xf32>
    %39 = arith.addf %35, %38 : vector<8x384xf32>
    %40 = vector.extract_strided_slice %39 {offsets = [0, 0], sizes = [8, 128], strides = [1, 1]} : vector<8x384xf32> to vector<8x128xf32>
    %cst_22 = arith.constant 0.176776692 : f32
    %41 = vector.broadcast %cst_22 : f32 to vector<8x128xf32>
    %42 = arith.mulf %40, %41 : vector<8x128xf32>
    %43 = vector.extract_strided_slice %39 {offsets = [0, 128], sizes = [8, 128], strides = [1, 1]} : vector<8x384xf32> to vector<8x128xf32>
    %44 = vector.extract_strided_slice %39 {offsets = [0, 256], sizes = [8, 128], strides = [1, 1]} : vector<8x384xf32> to vector<8x128xf32>
    %45 = arith.truncf %44 : vector<8x128xf32> to vector<8x128xbf16>
    %46 = vector.extract_strided_slice %42 {offsets = [0, 0], sizes = [8, 32], strides = [1, 1]} : vector<8x128xf32> to vector<8x32xf32>
    %47 = vector.extract_strided_slice %43 {offsets = [0, 0], sizes = [8, 32], strides = [1, 1]} : vector<8x128xf32> to vector<8x32xf32>
    %cst_23 = arith.constant dense<0.000000e+00> : vector<8x8xf32>
    %48 = tpu.matmul %46, %47, %cst_23 {dimension_numbers = #tpu.dot_dimension_numbers<[1], [1], [0], [0], [0, 0, 1, 0], [], []>} : vector<8x32xf32>, vector<8x32xf32>, vector<8x8xf32> -> vector<8x8xf32>
    %49 = arith.addf %48, %5 : vector<8x8xf32>
    %cst_24 = arith.constant dense<0xFF800000> : vector<8xf32>
    %50 = vector.multi_reduction <maximumf>, %49, %cst_24 [1] : vector<8x8xf32> to vector<8xf32>
    %51 = vector.shape_cast %50 : vector<8xf32> to vector<8x1xf32>
    %52 = vector.broadcast %51 : vector<8x1xf32> to vector<8x8xf32>
    %53 = arith.subf %49, %52 : vector<8x8xf32>
    %54 = math.exp %53 : vector<8x8xf32>
    %cst_25 = arith.constant dense<0.000000e+00> : vector<8xf32>
    %55 = vector.multi_reduction <add>, %54, %cst_25 [1] : vector<8x8xf32> to vector<8xf32>
    %56 = vector.shape_cast %55 : vector<8xf32> to vector<8x1xf32>
    %57 = tpu.reciprocal %56 {approx = true} : vector<8x1xf32> -> vector<8x1xf32>
    %58 = vector.broadcast %57 : vector<8x1xf32> to vector<8x8xf32>
    %59 = arith.mulf %54, %58 : vector<8x8xf32>
    %60 = arith.truncf %59 : vector<8x8xf32> to vector<8x8xbf16>
    %61 = vector.extract_strided_slice %45 {offsets = [0, 0], sizes = [8, 32], strides = [1, 1]} : vector<8x128xbf16> to vector<8x32xbf16>
    %cst_26 = arith.constant dense<0.000000e+00> : vector<8x32xf32>
    %62 = tpu.matmul %60, %61, %cst_26 {dimension_numbers = #tpu.dot_dimension_numbers<[1], [0], [0], [1], [0, 0, 1, 1], [], []>} : vector<8x8xbf16>, vector<8x32xbf16>, vector<8x32xf32> -> vector<8x32xf32>
    %63 = vector.extract_strided_slice %42 {offsets = [0, 32], sizes = [8, 32], strides = [1, 1]} : vector<8x128xf32> to vector<8x32xf32>
    %64 = vector.extract_strided_slice %43 {offsets = [0, 32], sizes = [8, 32], strides = [1, 1]} : vector<8x128xf32> to vector<8x32xf32>
    %cst_27 = arith.constant dense<0.000000e+00> : vector<8x8xf32>
    %65 = tpu.matmul %63, %64, %cst_27 {dimension_numbers = #tpu.dot_dimension_numbers<[1], [1], [0], [0], [0, 0, 1, 0], [], []>} : vector<8x32xf32>, vector<8x32xf32>, vector<8x8xf32> -> vector<8x8xf32>
    %66 = arith.addf %65, %5 : vector<8x8xf32>
    %cst_28 = arith.constant dense<0xFF800000> : vector<8xf32>
    %67 = vector.multi_reduction <maximumf>, %66, %cst_28 [1] : vector<8x8xf32> to vector<8xf32>
    %68 = vector.shape_cast %67 : vector<8xf32> to vector<8x1xf32>
    %69 = vector.broadcast %68 : vector<8x1xf32> to vector<8x8xf32>
    %70 = arith.subf %66, %69 : vector<8x8xf32>
    %71 = math.exp %70 : vector<8x8xf32>
    %cst_29 = arith.constant dense<0.000000e+00> : vector<8xf32>
    %72 = vector.multi_reduction <add>, %71, %cst_29 [1] : vector<8x8xf32> to vector<8xf32>
    %73 = vector.shape_cast %72 : vector<8xf32> to vector<8x1xf32>
    %74 = tpu.reciprocal %73 {approx = true} : vector<8x1xf32> -> vector<8x1xf32>
    %75 = vector.broadcast %74 : vector<8x1xf32> to vector<8x8xf32>
    %76 = arith.mulf %71, %75 : vector<8x8xf32>
    %77 = arith.truncf %76 : vector<8x8xf32> to vector<8x8xbf16>
    %78 = vector.extract_strided_slice %45 {offsets = [0, 32], sizes = [8, 32], strides = [1, 1]} : vector<8x128xbf16> to vector<8x32xbf16>
    %cst_30 = arith.constant dense<0.000000e+00> : vector<8x32xf32>
    %79 = tpu.matmul %77, %78, %cst_30 {dimension_numbers = #tpu.dot_dimension_numbers<[1], [0], [0], [1], [0, 0, 1, 1], [], []>} : vector<8x8xbf16>, vector<8x32xbf16>, vector<8x32xf32> -> vector<8x32xf32>
    %80 = vector.extract_strided_slice %42 {offsets = [0, 64], sizes = [8, 32], strides = [1, 1]} : vector<8x128xf32> to vector<8x32xf32>
    %81 = vector.extract_strided_slice %43 {offsets = [0, 64], sizes = [8, 32], strides = [1, 1]} : vector<8x128xf32> to vector<8x32xf32>
    %cst_31 = arith.constant dense<0.000000e+00> : vector<8x8xf32>
    %82 = tpu.matmul %80, %81, %cst_31 {dimension_numbers = #tpu.dot_dimension_numbers<[1], [1], [0], [0], [0, 0, 1, 0], [], []>} : vector<8x32xf32>, vector<8x32xf32>, vector<8x8xf32> -> vector<8x8xf32>
    %83 = arith.addf %82, %5 : vector<8x8xf32>
    %cst_32 = arith.constant dense<0xFF800000> : vector<8xf32>
    %84 = vector.multi_reduction <maximumf>, %83, %cst_32 [1] : vector<8x8xf32> to vector<8xf32>
    %85 = vector.shape_cast %84 : vector<8xf32> to vector<8x1xf32>
    %86 = vector.broadcast %85 : vector<8x1xf32> to vector<8x8xf32>
    %87 = arith.subf %83, %86 : vector<8x8xf32>
    %88 = math.exp %87 : vector<8x8xf32>
    %cst_33 = arith.constant dense<0.000000e+00> : vector<8xf32>
    %89 = vector.multi_reduction <add>, %88, %cst_33 [1] : vector<8x8xf32> to vector<8xf32>
    %90 = vector.shape_cast %89 : vector<8xf32> to vector<8x1xf32>
    %91 = tpu.reciprocal %90 {approx = true} : vector<8x1xf32> -> vector<8x1xf32>
    %92 = vector.broadcast %91 : vector<8x1xf32> to vector<8x8xf32>
    %93 = arith.mulf %88, %92 : vector<8x8xf32>
    %94 = arith.truncf %93 : vector<8x8xf32> to vector<8x8xbf16>
    %95 = vector.extract_strided_slice %45 {offsets = [0, 64], sizes = [8, 32], strides = [1, 1]} : vector<8x128xbf16> to vector<8x32xbf16>
    %cst_34 = arith.constant dense<0.000000e+00> : vector<8x32xf32>
    %96 = tpu.matmul %94, %95, %cst_34 {dimension_numbers = #tpu.dot_dimension_numbers<[1], [0], [0], [1], [0, 0, 1, 1], [], []>} : vector<8x8xbf16>, vector<8x32xbf16>, vector<8x32xf32> -> vector<8x32xf32>
    %97 = vector.extract_strided_slice %42 {offsets = [0, 96], sizes = [8, 32], strides = [1, 1]} : vector<8x128xf32> to vector<8x32xf32>
    %98 = vector.extract_strided_slice %43 {offsets = [0, 96], sizes = [8, 32], strides = [1, 1]} : vector<8x128xf32> to vector<8x32xf32>
    %cst_35 = arith.constant dense<0.000000e+00> : vector<8x8xf32>
    %99 = tpu.matmul %97, %98, %cst_35 {dimension_numbers = #tpu.dot_dimension_numbers<[1], [1], [0], [0], [0, 0, 1, 0], [], []>} : vector<8x32xf32>, vector<8x32xf32>, vector<8x8xf32> -> vector<8x8xf32>
    %100 = arith.addf %99, %5 : vector<8x8xf32>
    %cst_36 = arith.constant dense<0xFF800000> : vector<8xf32>
    %101 = vector.multi_reduction <maximumf>, %100, %cst_36 [1] : vector<8x8xf32> to vector<8xf32>
    %102 = vector.shape_cast %101 : vector<8xf32> to vector<8x1xf32>
    %103 = vector.broadcast %102 : vector<8x1xf32> to vector<8x8xf32>
    %104 = arith.subf %100, %103 : vector<8x8xf32>
    %105 = math.exp %104 : vector<8x8xf32>
    %cst_37 = arith.constant dense<0.000000e+00> : vector<8xf32>
    %106 = vector.multi_reduction <add>, %105, %cst_37 [1] : vector<8x8xf32> to vector<8xf32>
    %107 = vector.shape_cast %106 : vector<8xf32> to vector<8x1xf32>
    %108 = tpu.reciprocal %107 {approx = true} : vector<8x1xf32> -> vector<8x1xf32>
    %109 = vector.broadcast %108 : vector<8x1xf32> to vector<8x8xf32>
    %110 = arith.mulf %105, %109 : vector<8x8xf32>
    %111 = arith.truncf %110 : vector<8x8xf32> to vector<8x8xbf16>
    %112 = vector.extract_strided_slice %45 {offsets = [0, 96], sizes = [8, 32], strides = [1, 1]} : vector<8x128xbf16> to vector<8x32xbf16>
    %cst_38 = arith.constant dense<0.000000e+00> : vector<8x32xf32>
    %113 = tpu.matmul %111, %112, %cst_38 {dimension_numbers = #tpu.dot_dimension_numbers<[1], [0], [0], [1], [0, 0, 1, 1], [], []>} : vector<8x8xbf16>, vector<8x32xbf16>, vector<8x32xf32> -> vector<8x32xf32>
    %114 = tpu.concatenate %62, %79, %96, %113 in 1 : vector<8x32xf32>, vector<8x32xf32>, vector<8x32xf32>, vector<8x32xf32> -> vector<8x128xf32>
    %115 = arith.truncf %114 : vector<8x128xf32> to vector<8x128xbf16>
    %c0_39 = arith.constant 0 : index
    %c0_40 = arith.constant 0 : index
    %c0_41 = arith.constant 0 : index
    %116 = vector.load %arg8[%c0_39, %c0_40, %c0_41] : memref<1x128x128xbf16, #tpu.memory_space<vmem>>, vector<1x128x128xbf16>
    %117 = vector.shape_cast %116 : vector<1x128x128xbf16> to vector<128x128xbf16>
    %cst_42 = arith.constant dense<0.000000e+00> : vector<8x128xf32>
    %118 = tpu.matmul %115, %117, %cst_42 {dimension_numbers = #tpu.dot_dimension_numbers<[1], [0], [0], [1], [0, 0, 1, 1], [], []>} : vector<8x128xbf16>, vector<128x128xbf16>, vector<8x128xf32> -> vector<8x128xf32>
    %c0_43 = arith.constant 0 : index
    %c0_44 = arith.constant 0 : index
    %c0_45 = arith.constant 0 : index
    %119 = vector.load %arg9[%c0_43, %c0_44, %c0_45] : memref<1x1x128xf32, #tpu.memory_space<vmem>>, vector<1x1x128xf32>
    %120 = vector.shape_cast %119 : vector<1x1x128xf32> to vector<1x128xf32>
    %121 = vector.broadcast %120 : vector<1x128xf32> to vector<8x128xf32>
    %122 = arith.addf %118, %121 : vector<8x128xf32>
    %123 = arith.addf %3, %122 : vector<8x128xf32>
    %cst_46 = arith.constant dense<0.000000e+00> : vector<8xf32>
    %124 = vector.multi_reduction <add>, %123, %cst_46 [1] : vector<8x128xf32> to vector<8xf32>
    %125 = vector.shape_cast %124 : vector<8xf32> to vector<8x1xf32>
    %cst_47 = arith.constant 1.280000e+02 : f32
    %126 = vector.broadcast %cst_47 : f32 to vector<8x1xf32>
    %127 = arith.divf %125, %126 : vector<8x1xf32>
    %128 = vector.broadcast %127 : vector<8x1xf32> to vector<8x128xf32>
    %129 = arith.subf %123, %128 : vector<8x128xf32>
    %130 = arith.mulf %129, %129 : vector<8x128xf32>
    %cst_48 = arith.constant dense<0.000000e+00> : vector<8xf32>
    %131 = vector.multi_reduction <add>, %130, %cst_48 [1] : vector<8x128xf32> to vector<8xf32>
    %132 = vector.shape_cast %131 : vector<8xf32> to vector<8x1xf32>
    %cst_49 = arith.constant 1.280000e+02 : f32
    %133 = vector.broadcast %cst_49 : f32 to vector<8x1xf32>
    %134 = arith.divf %132, %133 : vector<8x1xf32>
    %135 = vector.broadcast %127 : vector<8x1xf32> to vector<8x128xf32>
    %136 = arith.subf %123, %135 : vector<8x128xf32>
    %cst_50 = arith.constant 9.99999974E-6 : f32
    %137 = vector.broadcast %cst_50 : f32 to vector<8x1xf32>
    %138 = arith.addf %134, %137 : vector<8x1xf32>
    %139 = math.rsqrt %138 : vector<8x1xf32>
    %140 = vector.broadcast %139 : vector<8x1xf32> to vector<8x128xf32>
    %141 = arith.mulf %136, %140 : vector<8x128xf32>
    %c0_51 = arith.constant 0 : index
    %c0_52 = arith.constant 0 : index
    %c0_53 = arith.constant 0 : index
    %142 = vector.load %arg10[%c0_51, %c0_52, %c0_53] : memref<1x1x128xf32, #tpu.memory_space<vmem>>, vector<1x1x128xf32>
    %143 = vector.shape_cast %142 : vector<1x1x128xf32> to vector<1x128xf32>
    %144 = vector.broadcast %143 : vector<1x128xf32> to vector<8x128xf32>
    %145 = arith.mulf %141, %144 : vector<8x128xf32>
    %c0_54 = arith.constant 0 : index
    %c0_55 = arith.constant 0 : index
    %c0_56 = arith.constant 0 : index
    %146 = vector.load %arg11[%c0_54, %c0_55, %c0_56] : memref<1x1x128xf32, #tpu.memory_space<vmem>>, vector<1x1x128xf32>
    %147 = vector.shape_cast %146 : vector<1x1x128xf32> to vector<1x128xf32>
    %148 = vector.broadcast %147 : vector<1x128xf32> to vector<8x128xf32>
    %149 = arith.addf %145, %148 : vector<8x128xf32>
    %150 = arith.truncf %149 : vector<8x128xf32> to vector<8x128xbf16>
    %c0_57 = arith.constant 0 : index
    %c0_58 = arith.constant 0 : index
    %c0_59 = arith.constant 0 : index
    %151 = vector.load %arg12[%c0_57, %c0_58, %c0_59] : memref<1x128x512xbf16, #tpu.memory_space<vmem>>, vector<1x128x512xbf16>
    %152 = vector.shape_cast %151 : vector<1x128x512xbf16> to vector<128x512xbf16>
    %cst_60 = arith.constant dense<0.000000e+00> : vector<8x512xf32>
    %153 = tpu.matmul %150, %152, %cst_60 {dimension_numbers = #tpu.dot_dimension_numbers<[1], [0], [0], [1], [0, 0, 1, 1], [], []>} : vector<8x128xbf16>, vector<128x512xbf16>, vector<8x512xf32> -> vector<8x512xf32>
    %c0_61 = arith.constant 0 : index
    %c0_62 = arith.constant 0 : index
    %c0_63 = arith.constant 0 : index
    %154 = vector.load %arg13[%c0_61, %c0_62, %c0_63] : memref<1x1x512xf32, #tpu.memory_space<vmem>>, vector<1x1x512xf32>
    %155 = vector.shape_cast %154 : vector<1x1x512xf32> to vector<1x512xf32>
    %156 = vector.broadcast %155 : vector<1x512xf32> to vector<8x512xf32>
    %157 = arith.addf %153, %156 : vector<8x512xf32>
    %cst_64 = arith.constant -1.702000e+00 : f32
    %158 = vector.broadcast %cst_64 : f32 to vector<8x512xf32>
    %159 = arith.mulf %158, %157 : vector<8x512xf32>
    %160 = math.exp %159 : vector<8x512xf32>
    %cst_65 = arith.constant 1.000000e+00 : f32
    %161 = vector.broadcast %cst_65 : f32 to vector<8x512xf32>
    %162 = arith.addf %161, %160 : vector<8x512xf32>
    %cst_66 = arith.constant 1.000000e+00 : f32
    %163 = vector.broadcast %cst_66 : f32 to vector<8x512xf32>
    %164 = arith.divf %163, %162 : vector<8x512xf32>
    %165 = arith.mulf %157, %164 : vector<8x512xf32>
    %166 = arith.truncf %165 : vector<8x512xf32> to vector<8x512xbf16>
    %c0_67 = arith.constant 0 : index
    %c0_68 = arith.constant 0 : index
    %c0_69 = arith.constant 0 : index
    %167 = vector.load %arg14[%c0_67, %c0_68, %c0_69] : memref<1x512x128xbf16, #tpu.memory_space<vmem>>, vector<1x512x128xbf16>
    %168 = vector.shape_cast %167 : vector<1x512x128xbf16> to vector<512x128xbf16>
    %cst_70 = arith.constant dense<0.000000e+00> : vector<8x128xf32>
    %169 = tpu.matmul %166, %168, %cst_70 {dimension_numbers = #tpu.dot_dimension_numbers<[1], [0], [0], [1], [0, 0, 1, 1], [], []>} : vector<8x512xbf16>, vector<512x128xbf16>, vector<8x128xf32> -> vector<8x128xf32>
    %c0_71 = arith.constant 0 : index
    %c0_72 = arith.constant 0 : index
    %c0_73 = arith.constant 0 : index
    %170 = vector.load %arg15[%c0_71, %c0_72, %c0_73] : memref<1x1x128xf32, #tpu.memory_space<vmem>>, vector<1x1x128xf32>
    %171 = vector.shape_cast %170 : vector<1x1x128xf32> to vector<1x128xf32>
    %172 = vector.broadcast %171 : vector<1x128xf32> to vector<8x128xf32>
    %173 = arith.addf %169, %172 : vector<8x128xf32>
    %174 = arith.addf %123, %173 : vector<8x128xf32>
    %c0_74 = arith.constant 0 : index
    %c0_75 = arith.constant 0 : index
    %175 = vector.load %arg17[%c0_74, %c0_75] : memref<8x128xf32, #tpu.memory_space<vmem>>, vector<8x128xf32>
    tpu.vector_store %arg17[%c0_74, %c0_75], %174 {strides = array<i32>} : memref<8x128xf32, #tpu.memory_space<vmem>>, vector<8x128xf32>,
    %c1_i32 = arith.constant 1 : i32
    %176 = arith.cmpi eq, %arg1, %c1_i32 : i32
    %177 = arith.extui %176 : i1 to i32
    %c0_i32_76 = arith.constant 0 : i32
    %178 = arith.cmpi ne, %177, %c0_i32_76 : i32
    scf.if %178 {
      %c0_77 = arith.constant 0 : index
      %c0_78 = arith.constant 0 : index
      %c0_79 = arith.constant 0 : index
      %179 = vector.load %arg16[%c0_77, %c0_78, %c0_79] : memref<1x8x128xf32, #tpu.memory_space<vmem>>, vector<1x8x128xf32>
      %180 = vector.shape_cast %179 : vector<1x8x128xf32> to vector<8x128xf32>
      %181 = vector.shape_cast %174 : vector<8x128xf32> to vector<1x8x128xf32>
      tpu.vector_store %arg16[%c0_77, %c0_78, %c0_79], %181 {strides = array<i32>} : memref<1x8x128xf32, #tpu.memory_space<vmem>>, vector<1x8x128xf32>,
    } else {
    }
    return
  }
  func.func @transform_0(%arg0: i32, %arg1: i32) -> (i32, i32, i32) {
    %c0_i32 = arith.constant 0 : i32
    %c0_i32_0 = arith.constant 0 : i32
    %c0_i32_1 = arith.constant 0 : i32
    return %arg0, %c0_i32, %c0_i32_0 : i32, i32, i32
  }
  func.func @transform_1(%arg0: i32, %arg1: i32) -> (i32, i32, i32) {
    %c0_i32 = arith.constant 0 : i32
    %c0_i32_0 = arith.constant 0 : i32
    %c0_i32_1 = arith.constant 0 : i32
    return %arg0, %c0_i32, %c0_i32_0 : i32, i32, i32
  }
  func.func @transform_2(%arg0: i32, %arg1: i32) -> (i32, i32, i32) {
    %c0_i32 = arith.constant 0 : i32
    %c0_i32_0 = arith.constant 0 : i32
    %c0_i32_1 = arith.constant 0 : i32
    return %arg1, %c0_i32, %c0_i32_0 : i32, i32, i32
  }
  func.func @transform_3(%arg0: i32, %arg1: i32) -> (i32, i32, i32) {
    %c0_i32 = arith.constant 0 : i32
    %c0_i32_0 = arith.constant 0 : i32
    %c0_i32_1 = arith.constant 0 : i32
    return %arg1, %c0_i32, %c0_i32_0 : i32, i32, i32
  }
  func.func @transform_4(%arg0: i32, %arg1: i32) -> (i32, i32, i32) {
    %c0_i32 = arith.constant 0 : i32
    %c0_i32_0 = arith.constant 0 : i32
    %c0_i32_1 = arith.constant 0 : i32
    return %arg1, %c0_i32, %c0_i32_0 : i32, i32, i32
  }
  func.func @transform_5(%arg0: i32, %arg1: i32) -> (i32, i32, i32) {
    %c0_i32 = arith.constant 0 : i32
    %c0_i32_0 = arith.constant 0 : i32
    %c0_i32_1 = arith.constant 0 : i32
    return %arg1, %c0_i32, %c0_i32_0 : i32, i32, i32
  }
  func.func @transform_6(%arg0: i32, %arg1: i32) -> (i32, i32, i32) {
    %c0_i32 = arith.constant 0 : i32
    %c0_i32_0 = arith.constant 0 : i32
    %c0_i32_1 = arith.constant 0 : i32
    return %arg1, %c0_i32, %c0_i32_0 : i32, i32, i32
  }
  func.func @transform_7(%arg0: i32, %arg1: i32) -> (i32, i32, i32) {
    %c0_i32 = arith.constant 0 : i32
    %c0_i32_0 = arith.constant 0 : i32
    %c0_i32_1 = arith.constant 0 : i32
    return %arg1, %c0_i32, %c0_i32_0 : i32, i32, i32
  }
  func.func @transform_8(%arg0: i32, %arg1: i32) -> (i32, i32, i32) {
    %c0_i32 = arith.constant 0 : i32
    %c0_i32_0 = arith.constant 0 : i32
    %c0_i32_1 = arith.constant 0 : i32
    return %arg1, %c0_i32, %c0_i32_0 : i32, i32, i32
  }
  func.func @transform_9(%arg0: i32, %arg1: i32) -> (i32, i32, i32) {
    %c0_i32 = arith.constant 0 : i32
    %c0_i32_0 = arith.constant 0 : i32
    %c0_i32_1 = arith.constant 0 : i32
    return %arg1, %c0_i32, %c0_i32_0 : i32, i32, i32
  }
  func.func @transform_10(%arg0: i32, %arg1: i32) -> (i32, i32, i32) {
    %c0_i32 = arith.constant 0 : i32
    %c0_i32_0 = arith.constant 0 : i32
    %c0_i32_1 = arith.constant 0 : i32
    return %arg1, %c0_i32, %c0_i32_0 : i32, i32, i32
  }
  func.func @transform_11(%arg0: i32, %arg1: i32) -> (i32, i32, i32) {
    %c0_i32 = arith.constant 0 : i32
    %c0_i32_0 = arith.constant 0 : i32
    %c0_i32_1 = arith.constant 0 : i32
    return %arg1, %c0_i32, %c0_i32_0 : i32, i32, i32
  }
  func.func @transform_12(%arg0: i32, %arg1: i32) -> (i32, i32, i32) {
    %c0_i32 = arith.constant 0 : i32
    %c0_i32_0 = arith.constant 0 : i32
    %c0_i32_1 = arith.constant 0 : i32
    return %arg1, %c0_i32, %c0_i32_0 : i32, i32, i32
  }
  func.func @transform_13(%arg0: i32, %arg1: i32) -> (i32, i32, i32) {
    %c0_i32 = arith.constant 0 : i32
    %c0_i32_0 = arith.constant 0 : i32
    %c0_i32_1 = arith.constant 0 : i32
    return %arg1, %c0_i32, %c0_i32_0 : i32, i32, i32
  }
  func.func @transform_14(%arg0: i32, %arg1: i32) -> (i32, i32, i32) {
    %c0_i32 = arith.constant 0 : i32
    %c0_i32_0 = arith.constant 0 : i32
    %c0_i32_1 = arith.constant 0 : i32
    return %arg0, %c0_i32, %c0_i32_0 : i32, i32, i32
  }
}

</mosaic_0001>

<llo_original>
// kernel: tpu_custom_call.1
$region0: #{tpu_custom_call.1}
  #allocation0 [shape = 'u32[]', space=smem, size = 0x4, offset = 0x4, fixed_abs, tag = 'smem constant byte address 0x4 - core index']
  #allocation1 [shape = 'u32[144,128]{1,0:T(1,128)}', space=vmem, size = 0x12000, scoped, tag = 'internal scratch']
  #allocation2 [shape = 'f32[8,128]{1,0:T(8,128)}', space=vmem, size = 0x1000, scoped, tag = 'scratch operand']
  %s0 = inlined_call_operand.hbm [shape: f32[2,8,128], index: 0, kind: input, shape index: {}]
  %s1 = inlined_call_operand.hbm [shape: f32[2,8,8], index: 1, kind: input, shape index: {}]
  %s2 = inlined_call_operand.hbm [shape: f32[2,1,128], index: 2, kind: input, shape index: {}]
  %s3 = inlined_call_operand.hbm [shape: f32[2,1,128], index: 3, kind: input, shape index: {}]
  %s4 = inlined_call_operand.hbm [shape: bf16[2,128,384], index: 4, kind: input, shape index: {}]
  %s5 = inlined_call_operand.vmem [shape: f32[2,1,384], index: 5, kind: input, shape index: {}]
  %s6 = inlined_call_operand.hbm [shape: bf16[2,128,128], index: 6, kind: input, shape index: {}]
  %s7 = inlined_call_operand.vmem [shape: f32[2,1,128], index: 7, kind: input, shape index: {}]
  %s8 = inlined_call_operand.vmem [shape: f32[2,1,128], index: 8, kind: input, shape index: {}]
  %s9 = inlined_call_operand.vmem [shape: f32[2,1,128], index: 9, kind: input, shape index: {}]
  %s10 = inlined_call_operand.hbm [shape: bf16[2,128,512], index: 10, kind: input, shape index: {}]
  %s11 = inlined_call_operand.vmem [shape: f32[2,1,512], index: 11, kind: input, shape index: {}]
  %s12 = inlined_call_operand.hbm [shape: bf16[2,512,128], index: 12, kind: input, shape index: {}]
  %s13 = inlined_call_operand.vmem [shape: f32[2,1,128], index: 13, kind: input, shape index: {}]
  %s14 = inlined_call_operand.hbm [shape: f32[2,8,128], index: 14, kind: output, shape index: {}]
  %s15 = sld [smem:[#allocation0]]
  $region129: #{tpu_custom_call.1} parent=0
    _
  %s17 = ssub.s32 1, %s15
  %s18 = scalar_select 0, %s17, %s15
  $region1: #{tpu_custom_call.1} parent=0
    #allocation3 [shape = 'u8[8192]{0}', space=vmem, size = 0x2000, scoped, tag = 'input window, operand 0']
    #allocation4 [shape = 's32[2]{0}', space=sflag, size = 0x8, scoped, tag = 'scoped memory for tpu_custom_call.1']
    #allocation5 [shape = 's32[2]{0}', space=sflag, size = 0x8, scoped, tag = 'scoped memory for tpu_custom_call.1']
    #allocation6 [shape = 'u8[8192]{0}', space=vmem, size = 0x2000, scoped, tag = 'input window, operand 1']
    #allocation7 [shape = 's32[2]{0}', space=sflag, size = 0x8, scoped, tag = 'scoped memory for tpu_custom_call.1']
    #allocation8 [shape = 'u8[1024]{0}', space=vmem, size = 0x400, scoped, tag = 'input window, operand 2']
    #allocation9 [shape = 'u8[1024]{0}', space=vmem, size = 0x400, scoped, tag = 'input window, operand 3']
    #allocation10 [shape = 's32[2]{0}', space=sflag, size = 0x8, scoped, tag = 'scoped memory for tpu_custom_call.1']
    #allocation11 [shape = 'u8[196608]{0}', space=vmem, size = 0x30000, scoped, tag = 'input window, operand 4']
    #allocation12 [shape = 'u8[65536]{0}', space=vmem, size = 0x10000, scoped, tag = 'input window, operand 6']
    #allocation13 [shape = 's32[2]{0}', space=sflag, size = 0x8, scoped, tag = 'scoped memory for tpu_custom_call.1']
    #allocation14 [shape = 'u8[262144]{0}', space=vmem, size = 0x40000, scoped, tag = 'input window, operand 10']
    #allocation15 [shape = 'u8[262144]{0}', space=vmem, size = 0x40000, scoped, tag = 'input window, operand 12']
    #allocation16 [shape = 's32[2]{0}', space=sflag, size = 0x8, scoped, tag = 'scoped memory for tpu_custom_call.1']
    #allocation17 [shape = 'u8[8192]{0}', space=vmem, size = 0x2000, scoped, tag = 'output window, operand 0']
    %19 = vsyncpa [#allocation4], 0
    %s20 = scalar_lea.sflag [#allocation4], 1
    %21 = vsyncpa %s20, 0
    %22 = vsyncpa [#allocation7], 0
    %s23 = scalar_lea.sflag [#allocation7], 1
    %24 = vsyncpa %s23, 0
    %25 = vsyncpa [#allocation10], 0
    %s26 = scalar_lea.sflag [#allocation10], 1
    %27 = vsyncpa %s26, 0
    %28 = vsyncpa [#allocation13], 0
    %s29 = scalar_lea.sflag [#allocation13], 1
    %30 = vsyncpa %s29, 0
    %31 = vsyncpa [#allocation16], 0
    %s32 = scalar_lea.sflag [#allocation16], 1
    %33 = vsyncpa %s32, 0
    %34 = vsyncpa [#allocation5], 0
    %s35 = scalar_lea.sflag [#allocation5], 1
    %36 = vsyncpa %s35, 0
    loop: start=0, step=1, limit=6
    $region2: #{tpu_custom_call.1} parent=1 // loop_pre_header
      _
    $region3: #{tpu_custom_call.1} parent=1 // loop_header
      %s38 = sphi 0, %s42
      %p39 = scmp.ge.s32.totalorder %s38, 6
      %s45 = sphi 0, %s57
      %s46 = sphi 0, %s53
      %s47 = sphi 0, %s45
      %s48 = sphi 0, %s46
      %s49 = sphi 0, %s47
      %s50 = sphi 0, %s48
      %s60 = sphi 0, %s62
      %s63 = sphi 0, %s60
      %s64 = sphi 0, %s63
      %s80 = sphi 0, %s64
      %s86 = sphi 0, %s88
      %s89 = sphi 0, %s86
      %s90 = sphi 0, %s89
      %s106 = sphi 0, %s90
      %s112 = sphi 0, %s114
      %s115 = sphi 0, %s112
      %s116 = sphi 0, %s115
      %s132 = sphi 0, %s116
      %s138 = sphi 0, %s140
      %s141 = sphi 0, %s138
      %s142 = sphi 0, %s141
      %s158 = sphi 0, %s142
      %s164 = sphi 0, %s166
      %s167 = sphi 0, %s164
      %s168 = sphi 0, %s167
      %s184 = sphi 0, %s168
      %s190 = sphi 0, %s192
      %s193 = sphi 0, %s190
      %s194 = sphi 0, %s193
      %s210 = sphi 0, %s194
      %s216 = sphi 0, %s218
      %s219 = sphi 0, %s216
      %s220 = sphi 0, %s219
      %s236 = sphi 0, %s220
      %s242 = sphi 0, %s244
      %s245 = sphi 0, %s242
      %s246 = sphi 0, %s245
      %s262 = sphi 0, %s246
      %s268 = sphi 0, %s270
      %s271 = sphi 0, %s268
      %s272 = sphi 0, %s271
      %s288 = sphi 0, %s272
      %s294 = sphi 0, %s296
      %s297 = sphi 0, %s294
      %s298 = sphi 0, %s297
      %s314 = sphi 0, %s298
      %s320 = sphi 0, %s322
      %s323 = sphi 0, %s320
      %s324 = sphi 0, %s323
      %s340 = sphi 0, %s324
      %s346 = sphi 0, %s348
      %s349 = sphi 0, %s346
      %s350 = sphi 0, %s349
      %s366 = sphi 0, %s350
      %s372 = sphi 0, %s374
      %s375 = sphi 0, %s372
      %s376 = sphi 0, %s375
      %s392 = sphi 0, %s376
      %s398 = sphi 0, %s400
      %s401 = sphi 0, %s398
      %s402 = sphi 0, %s401
      %s418 = sphi 0, %s402
      %s424 = sphi 0, %s426
      %s427 = sphi 0, %s424
      %s428 = sphi 0, %s427
      %s444 = sphi 0, %s428
    $region4: #{tpu_custom_call.1} parent=1 // loop_header_branch
      %41 = sbr.rel (%p39) target = $region8
    $region5: #{tpu_custom_call.1} parent=1 // loop_body
      %s43 = ssub.s32 %s38, 1
      %s44 = ssub.s32 %s38, 2
      %s51 = sadd.s32 1, %s46
      %p52 = scmp.ge.s32.totalorder %s51, 2
      %s53 = scalar_select %p52, 0, %s51
      %s54 = sadd.s32 1, %s45
      %s55 = scalar_select %p52, %s54, %s45
      %p56 = scmp.ge.s32.totalorder %s55, 2
      %s57 = scalar_select %p56, 0, %s55
      %s58 = ssub.s32 %s45, %s57
      %p59 = scmp.eq.s32.totalorder %s58, 0
      %s61 = sadd.s32 %s60, 1
      %s62 = scalar_select %p59, %s60, %s61
      %p65 = pneg %p59
      %p66 = scmp.eq.s32.totalorder %s38, 3
      %p67 = por %p65, %p66
      %p68 = scmp.ne.s32.totalorder %s60, %s63
      %p69 = scmp.eq.s32.totalorder %s38, 0
      %p70 = por %p68, %p69
      %p71 = scmp.ne.s32.totalorder %s60, %s63
      %p72 = scmp.eq.s32.totalorder %s43, 3
      %p73 = por %p71, %p72
      %p74 = scmp.ne.s32.totalorder %s63, %s64
      %p75 = scmp.eq.s32.totalorder %s43, 0
      %p76 = por %p74, %p75
      %p77 = scmp.ne.s32.totalorder %s63, %s64
      %p78 = scmp.eq.s32.totalorder %s44, 3
      %p79 = por %p77, %p78
      %p81 = scmp.ne.s32.totalorder %s64, %s80
      %p82 = scmp.eq.s32.totalorder %s44, 0
      %p83 = por %p81, %p82
      %s84 = ssub.s32 %s45, %s57
      %p85 = scmp.eq.s32.totalorder %s84, 0
      %s87 = sadd.s32 %s86, 1
      %s88 = scalar_select %p85, %s86, %s87
      %p91 = pneg %p85
      %p92 = scmp.eq.s32.totalorder %s38, 3
      %p93 = por %p91, %p92
      %p94 = scmp.ne.s32.totalorder %s86, %s89
      %p95 = scmp.eq.s32.totalorder %s38, 0
      %p96 = por %p94, %p95
      %p97 = scmp.ne.s32.totalorder %s86, %s89
      %p98 = scmp.eq.s32.totalorder %s43, 3
      %p99 = por %p97, %p98
      %p100 = scmp.ne.s32.totalorder %s89, %s90
      %p101 = scmp.eq.s32.totalorder %s43, 0
      %p102 = por %p100, %p101
      %p103 = scmp.ne.s32.totalorder %s89, %s90
      %p104 = scmp.eq.s32.totalorder %s44, 3
      %p105 = por %p103, %p104
      %p107 = scmp.ne.s32.totalorder %s90, %s106
      %p108 = scmp.eq.s32.totalorder %s44, 0
      %p109 = por %p107, %p108
      %s110 = ssub.s32 %s46, %s53
      %p111 = scmp.eq.s32.totalorder %s110, 0
      %s113 = sadd.s32 %s112, 1
      %s114 = scalar_select %p111, %s112, %s113
      %p117 = pneg %p111
      %p118 = scmp.eq.s32.totalorder %s38, 3
      %p119 = por %p117, %p118
      %p120 = scmp.ne.s32.totalorder %s112, %s115
      %p121 = scmp.eq.s32.totalorder %s38, 0
      %p122 = por %p120, %p121
      %p123 = scmp.ne.s32.totalorder %s112, %s115
      %p124 = scmp.eq.s32.totalorder %s43, 3
      %p125 = por %p123, %p124
      %p126 = scmp.ne.s32.totalorder %s115, %s116
      %p127 = scmp.eq.s32.totalorder %s43, 0
      %p128 = por %p126, %p127
      %p129 = scmp.ne.s32.totalorder %s115, %s116
      %p130 = scmp.eq.s32.totalorder %s44, 3
      %p131 = por %p129, %p130
      %p133 = scmp.ne.s32.totalorder %s116, %s132
      %p134 = scmp.eq.s32.totalorder %s44, 0
      %p135 = por %p133, %p134
      %s136 = ssub.s32 %s46, %s53
      %p137 = scmp.eq.s32.totalorder %s136, 0
      %s139 = sadd.s32 %s138, 1
      %s140 = scalar_select %p137, %s138, %s139
      %p143 = pneg %p137
      %p144 = scmp.eq.s32.totalorder %s38, 3
      %p145 = por %p143, %p144
      %p146 = scmp.ne.s32.totalorder %s138, %s141
      %p147 = scmp.eq.s32.totalorder %s38, 0
      %p148 = por %p146, %p147
      %p149 = scmp.ne.s32.totalorder %s138, %s141
      %p150 = scmp.eq.s32.totalorder %s43, 3
      %p151 = por %p149, %p150
      %p152 = scmp.ne.s32.totalorder %s141, %s142
      %p153 = scmp.eq.s32.totalorder %s43, 0
      %p154 = por %p152, %p153
      %p155 = scmp.ne.s32.totalorder %s141, %s142
      %p156 = scmp.eq.s32.totalorder %s44, 3
      %p157 = por %p155, %p156
      %p159 = scmp.ne.s32.totalorder %s142, %s158
      %p160 = scmp.eq.s32.totalorder %s44, 0
      %p161 = por %p159, %p160
      %s162 = ssub.s32 %s46, %s53
      %p163 = scmp.eq.s32.totalorder %s162, 0
      %s165 = sadd.s32 %s164, 1
      %s166 = scalar_select %p163, %s164, %s165
      %p169 = pneg %p163
      %p170 = scmp.eq.s32.totalorder %s38, 3
      %p171 = por %p169, %p170
      %p172 = scmp.ne.s32.totalorder %s164, %s167
      %p173 = scmp.eq.s32.totalorder %s38, 0
      %p174 = por %p172, %p173
      %p175 = scmp.ne.s32.totalorder %s164, %s167
      %p176 = scmp.eq.s32.totalorder %s43, 3
      %p177 = por %p175, %p176
      %p178 = scmp.ne.s32.totalorder %s167, %s168
      %p179 = scmp.eq.s32.totalorder %s43, 0
      %p180 = por %p178, %p179
      %p181 = scmp.ne.s32.totalorder %s167, %s168
      %p182 = scmp.eq.s32.totalorder %s44, 3
      %p183 = por %p181, %p182
      %p185 = scmp.ne.s32.totalorder %s168, %s184
      %p186 = scmp.eq.s32.totalorder %s44, 0
      %p187 = por %p185, %p186
      %s188 = ssub.s32 %s46, %s53
      %p189 = scmp.eq.s32.totalorder %s188, 0
      %s191 = sadd.s32 %s190, 1
      %s192 = scalar_select %p189, %s190, %s191
      %p195 = pneg %p189
      %p196 = scmp.eq.s32.totalorder %s38, 3
      %p197 = por %p195, %p196
      %p198 = scmp.ne.s32.totalorder %s190, %s193
      %p199 = scmp.eq.s32.totalorder %s38, 0
      %p200 = por %p198, %p199
      %p201 = scmp.ne.s32.totalorder %s190, %s193
      %p202 = scmp.eq.s32.totalorder %s43, 3
      %p203 = por %p201, %p202
      %p204 = scmp.ne.s32.totalorder %s193, %s194
      %p205 = scmp.eq.s32.totalorder %s43, 0
      %p206 = por %p204, %p205
      %p207 = scmp.ne.s32.totalorder %s193, %s194
      %p208 = scmp.eq.s32.totalorder %s44, 3
      %p209 = por %p207, %p208
      %p211 = scmp.ne.s32.totalorder %s194, %s210
      %p212 = scmp.eq.s32.totalorder %s44, 0
      %p213 = por %p211, %p212
      %s214 = ssub.s32 %s46, %s53
      %p215 = scmp.eq.s32.totalorder %s214, 0
      %s217 = sadd.s32 %s216, 1
      %s218 = scalar_select %p215, %s216, %s217
      %p221 = pneg %p215
      %p222 = scmp.eq.s32.totalorder %s38, 3
      %p223 = por %p221, %p222
      %p224 = scmp.ne.s32.totalorder %s216, %s219
      %p225 = scmp.eq.s32.totalorder %s38, 0
      %p226 = por %p224, %p225
      %p227 = scmp.ne.s32.totalorder %s216, %s219
      %p228 = scmp.eq.s32.totalorder %s43, 3
      %p229 = por %p227, %p228
      %p230 = scmp.ne.s32.totalorder %s219, %s220
      %p231 = scmp.eq.s32.totalorder %s43, 0
      %p232 = por %p230, %p231
      %p233 = scmp.ne.s32.totalorder %s219, %s220
      %p234 = scmp.eq.s32.totalorder %s44, 3
      %p235 = por %p233, %p234
      %p237 = scmp.ne.s32.totalorder %s220, %s236
      %p238 = scmp.eq.s32.totalorder %s44, 0
      %p239 = por %p237, %p238
      %s240 = ssub.s32 %s46, %s53
      %p241 = scmp.eq.s32.totalorder %s240, 0
      %s243 = sadd.s32 %s242, 1
      %s244 = scalar_select %p241, %s242, %s243
      %p247 = pneg %p241
      %p248 = scmp.eq.s32.totalorder %s38, 3
      %p249 = por %p247, %p248
      %p250 = scmp.ne.s32.totalorder %s242, %s245
      %p251 = scmp.eq.s32.totalorder %s38, 0
      %p252 = por %p250, %p251
      %p253 = scmp.ne.s32.totalorder %s242, %s245
      %p254 = scmp.eq.s32.totalorder %s43, 3
      %p255 = por %p253, %p254
      %p256 = scmp.ne.s32.totalorder %s245, %s246
      %p257 = scmp.eq.s32.totalorder %s43, 0
      %p258 = por %p256, %p257
      %p259 = scmp.ne.s32.totalorder %s245, %s246
      %p260 = scmp.eq.s32.totalorder %s44, 3
      %p261 = por %p259, %p260
      %p263 = scmp.ne.s32.totalorder %s246, %s262
      %p264 = scmp.eq.s32.totalorder %s44, 0
      %p265 = por %p263, %p264
      %s266 = ssub.s32 %s46, %s53
      %p267 = scmp.eq.s32.totalorder %s266, 0
      %s269 = sadd.s32 %s268, 1
      %s270 = scalar_select %p267, %s268, %s269
      %p273 = pneg %p267
      %p274 = scmp.eq.s32.totalorder %s38, 3
      %p275 = por %p273, %p274
      %p276 = scmp.ne.s32.totalorder %s268, %s271
      %p277 = scmp.eq.s32.totalorder %s38, 0
      %p278 = por %p276, %p277
      %p279 = scmp.ne.s32.totalorder %s268, %s271
      %p280 = scmp.eq.s32.totalorder %s43, 3
      %p281 = por %p279, %p280
      %p282 = scmp.ne.s32.totalorder %s271, %s272
      %p283 = scmp.eq.s32.totalorder %s43, 0
      %p284 = por %p282, %p283
      %p285 = scmp.ne.s32.totalorder %s271, %s272
      %p286 = scmp.eq.s32.totalorder %s44, 3
      %p287 = por %p285, %p286
      %p289 = scmp.ne.s32.totalorder %s272, %s288
      %p290 = scmp.eq.s32.totalorder %s44, 0
      %p291 = por %p289, %p290
      %s292 = ssub.s32 %s46, %s53
      %p293 = scmp.eq.s32.totalorder %s292, 0
      %s295 = sadd.s32 %s294, 1
      %s296 = scalar_select %p293, %s294, %s295
      %p299 = pneg %p293
      %p300 = scmp.eq.s32.totalorder %s38, 3
      %p301 = por %p299, %p300
      %p302 = scmp.ne.s32.totalorder %s294, %s297
      %p303 = scmp.eq.s32.totalorder %s38, 0
      %p304 = por %p302, %p303
      %p305 = scmp.ne.s32.totalorder %s294, %s297
      %p306 = scmp.eq.s32.totalorder %s43, 3
      %p307 = por %p305, %p306
      %p308 = scmp.ne.s32.totalorder %s297, %s298
      %p309 = scmp.eq.s32.totalorder %s43, 0
      %p310 = por %p308, %p309
      %p311 = scmp.ne.s32.totalorder %s297, %s298
      %p312 = scmp.eq.s32.totalorder %s44, 3
      %p313 = por %p311, %p312
      %p315 = scmp.ne.s32.totalorder %s298, %s314
      %p316 = scmp.eq.s32.totalorder %s44, 0
      %p317 = por %p315, %p316
      %s318 = ssub.s32 %s46, %s53
      %p319 = scmp.eq.s32.totalorder %s318, 0
      %s321 = sadd.s32 %s320, 1
      %s322 = scalar_select %p319, %s320, %s321
      %p325 = pneg %p319
      %p326 = scmp.eq.s32.totalorder %s38, 3
      %p327 = por %p325, %p326
      %p328 = scmp.ne.s32.totalorder %s320, %s323
      %p329 = scmp.eq.s32.totalorder %s38, 0
      %p330 = por %p328, %p329
      %p331 = scmp.ne.s32.totalorder %s320, %s323
      %p332 = scmp.eq.s32.totalorder %s43, 3
      %p333 = por %p331, %p332
      %p334 = scmp.ne.s32.totalorder %s323, %s324
      %p335 = scmp.eq.s32.totalorder %s43, 0
      %p336 = por %p334, %p335
      %p337 = scmp.ne.s32.totalorder %s323, %s324
      %p338 = scmp.eq.s32.totalorder %s44, 3
      %p339 = por %p337, %p338
      %p341 = scmp.ne.s32.totalorder %s324, %s340
      %p342 = scmp.eq.s32.totalorder %s44, 0
      %p343 = por %p341, %p342
      %s344 = ssub.s32 %s46, %s53
      %p345 = scmp.eq.s32.totalorder %s344, 0
      %s347 = sadd.s32 %s346, 1
      %s348 = scalar_select %p345, %s346, %s347
      %p351 = pneg %p345
      %p352 = scmp.eq.s32.totalorder %s38, 3
      %p353 = por %p351, %p352
      %p354 = scmp.ne.s32.totalorder %s346, %s349
      %p355 = scmp.eq.s32.totalorder %s38, 0
      %p356 = por %p354, %p355
      %p357 = scmp.ne.s32.totalorder %s346, %s349
      %p358 = scmp.eq.s32.totalorder %s43, 3
      %p359 = por %p357, %p358
      %p360 = scmp.ne.s32.totalorder %s349, %s350
      %p361 = scmp.eq.s32.totalorder %s43, 0
      %p362 = por %p360, %p361
      %p363 = scmp.ne.s32.totalorder %s349, %s350
      %p364 = scmp.eq.s32.totalorder %s44, 3
      %p365 = por %p363, %p364
      %p367 = scmp.ne.s32.totalorder %s350, %s366
      %p368 = scmp.eq.s32.totalorder %s44, 0
      %p369 = por %p367, %p368
      %s370 = ssub.s32 %s46, %s53
      %p371 = scmp.eq.s32.totalorder %s370, 0
      %s373 = sadd.s32 %s372, 1
      %s374 = scalar_select %p371, %s372, %s373
      %p377 = pneg %p371
      %p378 = scmp.eq.s32.totalorder %s38, 3
      %p379 = por %p377, %p378
      %p380 = scmp.ne.s32.totalorder %s372, %s375
      %p381 = scmp.eq.s32.totalorder %s38, 0
      %p382 = por %p380, %p381
      %p383 = scmp.ne.s32.totalorder %s372, %s375
      %p384 = scmp.eq.s32.totalorder %s43, 3
      %p385 = por %p383, %p384
      %p386 = scmp.ne.s32.totalorder %s375, %s376
      %p387 = scmp.eq.s32.totalorder %s43, 0
      %p388 = por %p386, %p387
      %p389 = scmp.ne.s32.totalorder %s375, %s376
      %p390 = scmp.eq.s32.totalorder %s44, 3
      %p391 = por %p389, %p390
      %p393 = scmp.ne.s32.totalorder %s376, %s392
      %p394 = scmp.eq.s32.totalorder %s44, 0
      %p395 = por %p393, %p394
      %s396 = ssub.s32 %s46, %s53
      %p397 = scmp.eq.s32.totalorder %s396, 0
      %s399 = sadd.s32 %s398, 1
      %s400 = scalar_select %p397, %s398, %s399
      %p403 = pneg %p397
      %p404 = scmp.eq.s32.totalorder %s38, 3
      %p405 = por %p403, %p404
      %p406 = scmp.ne.s32.totalorder %s398, %s401
      %p407 = scmp.eq.s32.totalorder %s38, 0
      %p408 = por %p406, %p407
      %p409 = scmp.ne.s32.totalorder %s398, %s401
      %p410 = scmp.eq.s32.totalorder %s43, 3
      %p411 = por %p409, %p410
      %p412 = scmp.ne.s32.totalorder %s401, %s402
      %p413 = scmp.eq.s32.totalorder %s43, 0
      %p414 = por %p412, %p413
      %p415 = scmp.ne.s32.totalorder %s401, %s402
      %p416 = scmp.eq.s32.totalorder %s44, 3
      %p417 = por %p415, %p416
      %p419 = scmp.ne.s32.totalorder %s402, %s418
      %p420 = scmp.eq.s32.totalorder %s44, 0
      %p421 = por %p419, %p420
      %s422 = ssub.s32 %s45, %s57
      %p423 = scmp.eq.s32.totalorder %s422, 0
      %s425 = sadd.s32 %s424, 1
      %s426 = scalar_select %p423, %s424, %s425
      %p429 = pneg %p423
      %p430 = scmp.eq.s32.totalorder %s38, 3
      %p431 = por %p429, %p430
      %p432 = scmp.ne.s32.totalorder %s424, %s427
      %p433 = scmp.eq.s32.totalorder %s38, 0
      %p434 = por %p432, %p433
      %p435 = scmp.ne.s32.totalorder %s424, %s427
      %p436 = scmp.eq.s32.totalorder %s43, 3
      %p437 = por %p435, %p436
      %p438 = scmp.ne.s32.totalorder %s427, %s428
      %p439 = scmp.eq.s32.totalorder %s43, 0
      %p440 = por %p438, %p439
      %p441 = scmp.ne.s32.totalorder %s427, %s428
      %p442 = scmp.eq.s32.totalorder %s44, 3
      %p443 = por %p441, %p442
      %p445 = scmp.ne.s32.totalorder %s428, %s444
      %p446 = scmp.eq.s32.totalorder %s44, 0
      %p447 = por %p445, %p446
      %p448 = scmp.le.s32.totalorder 1, %s38
      %p449 = scmp.lt.s32.totalorder %s38, 5
      %p450 = pnand %p448, %p449
      %p451 = pneg %p450
      // Predicated region
      $region9: #{tpu_custom_call.1} parent=5 // pred_check
        _
      $region10: #{tpu_custom_call.1} parent=5 // pred_check_branch
        %453 = sbr.rel (%p450) target = $region12
      $region11: #{tpu_custom_call.1} parent=5 // pred_region
        %s454 = ssub.s32 %s38, 1
      $region12: #{tpu_custom_call.1} parent=5 // pred_fallthru
        _
      %p455 = scmp.lt.s32.totalorder %s38, 4
      // Predicated region
      $region13: #{tpu_custom_call.1} parent=5 // pred_check
        %p456 = pneg %p455
      $region14: #{tpu_custom_call.1} parent=5 // pred_check_branch
        %458 = sbr.rel (%p456) target = $region16
      $region15: #{tpu_custom_call.1} parent=5 // pred_region
        // Predicated region
        $region17: #{tpu_custom_call.1} parent=15 // pred_check
          %p459 = pneg %p70
        $region18: #{tpu_custom_call.1} parent=15 // pred_check_branch
          %461 = sbr.rel (%p459) target = $region20
        $region19: #{tpu_custom_call.1} parent=15 // pred_region
          %s462 = sand.u32 %s60, 1
          %s463 = scalar_lea.sflag [#allocation4], %s462
          %s464 = sand.u32 %s60, 1
          %s465 = smul.addr %s464, 8
          %s466 = scalar_lea.vmem [#allocation3], %s465
          %s468 = ssub.s32 128, 128
          %469 = vsyncadd %s463, %s468
          %s470 = smul.addr %s45, 128
          %s471 = scalar_lea.hbm %s0, %s470
          %s473 = sshll.u32 %s466, 4
          %s474 = int_to_ptr.vmem [resolvable:$true] %s473
          %476 = dma.hbm_to_vmem [thread:$0]  %s471, 128, %s474, %s463
        $region20: #{tpu_custom_call.1} parent=15 // pred_fallthru
          _
        // Predicated region
        $region21: #{tpu_custom_call.1} parent=15 // pred_check
          %p477 = pneg %p96
        $region22: #{tpu_custom_call.1} parent=15 // pred_check_branch
          %479 = sbr.rel (%p477) target = $region24
        $region23: #{tpu_custom_call.1} parent=15 // pred_region
          %s480 = sand.u32 %s38, 1
          %s481 = scalar_lea.sflag [#allocation7], %s480
          %s482 = sand.u32 %s86, 1
          %s483 = smul.addr %s482, 8
          %s484 = scalar_lea.vmem [#allocation6], %s483
          %s486 = ssub.s32 128, 128
          %487 = vsyncadd %s481, %s486
          %s488 = smul.addr %s45, 128
          %s489 = scalar_lea.hbm %s1, %s488
          %s491 = sshll.u32 %s484, 4
          %s492 = int_to_ptr.vmem [resolvable:$true] %s491
          %494 = dma.hbm_to_vmem [thread:$0]  %s489, 128, %s492, %s481
        $region24: #{tpu_custom_call.1} parent=15 // pred_fallthru
          _
        // Predicated region
        $region25: #{tpu_custom_call.1} parent=15 // pred_check
          %p495 = pneg %p122
        $region26: #{tpu_custom_call.1} parent=15 // pred_check_branch
          %497 = sbr.rel (%p495) target = $region28
        $region27: #{tpu_custom_call.1} parent=15 // pred_region
          %s498 = sand.u32 %s38, 1
          %s499 = scalar_lea.sflag [#allocation7], %s498
          %s500 = sand.u32 %s112, 1
          %s501 = scalar_lea.vmem [#allocation8], %s500
          %s503 = ssub.s32 16, 16
          %504 = vsyncadd %s499, %s503
          %s505 = smul.addr %s46, 16
          %s506 = scalar_lea.hbm %s2, %s505
          %s508 = sshll.u32 %s501, 4
          %s509 = int_to_ptr.vmem [resolvable:$true] %s508
          %511 = dma.hbm_to_vmem [thread:$0]  %s506, 16, %s509, %s499
        $region28: #{tpu_custom_call.1} parent=15 // pred_fallthru
          _
        // Predicated region
        $region29: #{tpu_custom_call.1} parent=15 // pred_check
          %p512 = pneg %p148
        $region30: #{tpu_custom_call.1} parent=15 // pred_check_branch
          %514 = sbr.rel (%p512) target = $region32
        $region31: #{tpu_custom_call.1} parent=15 // pred_region
          %s515 = sand.u32 %s38, 1
          %s516 = scalar_lea.sflag [#allocation10], %s515
          %s517 = sand.u32 %s138, 1
          %s518 = scalar_lea.vmem [#allocation9], %s517
          %s520 = ssub.s32 16, 16
          %521 = vsyncadd %s516, %s520
          %s522 = smul.addr %s46, 16
          %s523 = scalar_lea.hbm %s3, %s522
          %s525 = sshll.u32 %s518, 4
          %s526 = int_to_ptr.vmem [resolvable:$true] %s525
          %528 = dma.hbm_to_vmem [thread:$0]  %s523, 16, %s526, %s516
        $region32: #{tpu_custom_call.1} parent=15 // pred_fallthru
          _
        // Predicated region
        $region33: #{tpu_custom_call.1} parent=15 // pred_check
          %p529 = pneg %p174
        $region34: #{tpu_custom_call.1} parent=15 // pred_check_branch
          %531 = sbr.rel (%p529) target = $region36
        $region35: #{tpu_custom_call.1} parent=15 // pred_region
          %s532 = sand.u32 %s38, 1
          %s533 = scalar_lea.sflag [#allocation10], %s532
          %s534 = sand.u32 %s164, 1
          %s535 = smul.addr %s534, 192
          %s536 = scalar_lea.vmem [#allocation11], %s535
          %s538 = ssub.s32 3072, 3072
          %539 = vsyncadd %s533, %s538
          %s540 = smul.addr %s46, 48
          %s541 = smul.addr %s540, 64
          %s542 = scalar_lea.hbm %s4, %s541
          %s543 = sshll.u32 %s536, 4
          %s544 = int_to_ptr.vmem [resolvable:$true] %s543
          %549 = dma.hbm_to_vmem [thread:$0]  %s542, 3072, %s544, %s533, 192, 192, 12
        $region36: #{tpu_custom_call.1} parent=15 // pred_fallthru
          _
        // Predicated region
        $region37: #{tpu_custom_call.1} parent=15 // pred_check
          %p550 = pneg %p200
        $region38: #{tpu_custom_call.1} parent=15 // pred_check_branch
          %552 = sbr.rel (%p550) target = $region40
        $region39: #{tpu_custom_call.1} parent=15 // pred_region
          %p553 = scmp.lt.s32.totalorder %s46, 1
          %s554 = scalar_select %p553, %s46, 1
          %s555 = smul.addr %s554, 3
          %s556 = scalar_lea.vmem %s5, %s555
        $region40: #{tpu_custom_call.1} parent=15 // pred_fallthru
          _
        // Predicated region
        $region41: #{tpu_custom_call.1} parent=15 // pred_check
          %p557 = pneg %p226
        $region42: #{tpu_custom_call.1} parent=15 // pred_check_branch
          %559 = sbr.rel (%p557) target = $region44
        $region43: #{tpu_custom_call.1} parent=15 // pred_region
          %s560 = sand.u32 %s38, 1
          %s561 = scalar_lea.sflag [#allocation13], %s560
          %s562 = sand.u32 %s216, 1
          %s563 = smul.addr %s562, 64
          %s564 = scalar_lea.vmem [#allocation12], %s563
          %s566 = ssub.s32 1024, 1024
          %567 = vsyncadd %s561, %s566
          %s568 = smul.addr %s46, 16
          %s569 = smul.addr %s568, 64
          %s570 = scalar_lea.hbm %s6, %s569
          %s571 = sshll.u32 %s564, 4
          %s572 = int_to_ptr.vmem [resolvable:$true] %s571
          %577 = dma.hbm_to_vmem [thread:$0]  %s570, 1024, %s572, %s561, 64, 64, 4
        $region44: #{tpu_custom_call.1} parent=15 // pred_fallthru
          _
        // Predicated region
        $region45: #{tpu_custom_call.1} parent=15 // pred_check
          %p578 = pneg %p252
        $region46: #{tpu_custom_call.1} parent=15 // pred_check_branch
          %580 = sbr.rel (%p578) target = $region48
        $region47: #{tpu_custom_call.1} parent=15 // pred_region
          %p581 = scmp.lt.s32.totalorder %s46, 1
          %s582 = scalar_select %p581, %s46, 1
          %s583 = scalar_lea.vmem %s7, %s582
        $region48: #{tpu_custom_call.1} parent=15 // pred_fallthru
          _
        // Predicated region
        $region49: #{tpu_custom_call.1} parent=15 // pred_check
          %p584 = pneg %p278
        $region50: #{tpu_custom_call.1} parent=15 // pred_check_branch
          %586 = sbr.rel (%p584) target = $region52
        $region51: #{tpu_custom_call.1} parent=15 // pred_region
          %p587 = scmp.lt.s32.totalorder %s46, 1
          %s588 = scalar_select %p587, %s46, 1
          %s589 = scalar_lea.vmem %s8, %s588
        $region52: #{tpu_custom_call.1} parent=15 // pred_fallthru
          _
        // Predicated region
        $region53: #{tpu_custom_call.1} parent=15 // pred_check
          %p590 = pneg %p304
        $region54: #{tpu_custom_call.1} parent=15 // pred_check_branch
          %592 = sbr.rel (%p590) target = $region56
        $region55: #{tpu_custom_call.1} parent=15 // pred_region
          %p593 = scmp.lt.s32.totalorder %s46, 1
          %s594 = scalar_select %p593, %s46, 1
          %s595 = scalar_lea.vmem %s9, %s594
        $region56: #{tpu_custom_call.1} parent=15 // pred_fallthru
          _
        // Predicated region
        $region57: #{tpu_custom_call.1} parent=15 // pred_check
          %p596 = pneg %p330
        $region58: #{tpu_custom_call.1} parent=15 // pred_check_branch
          %598 = sbr.rel (%p596) target = $region60
        $region59: #{tpu_custom_call.1} parent=15 // pred_region
          %s599 = sand.u32 %s38, 1
          %s600 = scalar_lea.sflag [#allocation13], %s599
          %s601 = sand.u32 %s320, 1
          %s602 = smul.addr %s601, 256
          %s603 = scalar_lea.vmem [#allocation14], %s602
          %s605 = ssub.s32 4096, 4096
          %606 = vsyncadd %s600, %s605
          %s607 = smul.addr %s46, 64
          %s608 = smul.addr %s607, 64
          %s609 = scalar_lea.hbm %s10, %s608
          %s610 = sshll.u32 %s603, 4
          %s611 = int_to_ptr.vmem [resolvable:$true] %s610
          %616 = dma.hbm_to_vmem [thread:$0]  %s609, 4096, %s611, %s600, 256, 256, 16
        $region60: #{tpu_custom_call.1} parent=15 // pred_fallthru
          _
        // Predicated region
        $region61: #{tpu_custom_call.1} parent=15 // pred_check
          %p617 = pneg %p356
        $region62: #{tpu_custom_call.1} parent=15 // pred_check_branch
          %619 = sbr.rel (%p617) target = $region64
        $region63: #{tpu_custom_call.1} parent=15 // pred_region
          %p620 = scmp.lt.s32.totalorder %s46, 1
          %s621 = scalar_select %p620, %s46, 1
          %s622 = smul.addr %s621, 4
          %s623 = scalar_lea.vmem %s11, %s622
        $region64: #{tpu_custom_call.1} parent=15 // pred_fallthru
          _
        // Predicated region
        $region65: #{tpu_custom_call.1} parent=15 // pred_check
          %p624 = pneg %p382
        $region66: #{tpu_custom_call.1} parent=15 // pred_check_branch
          %626 = sbr.rel (%p624) target = $region68
        $region67: #{tpu_custom_call.1} parent=15 // pred_region
          %s627 = sand.u32 %s372, 1
          %s628 = scalar_lea.sflag [#allocation16], %s627
          %s629 = sand.u32 %s372, 1
          %s630 = smul.addr %s629, 256
          %s631 = scalar_lea.vmem [#allocation15], %s630
          %s633 = ssub.s32 4096, 4096
          %634 = vsyncadd %s628, %s633
          %s635 = smul.addr %s46, 64
          %s636 = smul.addr %s635, 64
          %s637 = scalar_lea.hbm %s12, %s636
          %s638 = sshll.u32 %s631, 4
          %s639 = int_to_ptr.vmem [resolvable:$true] %s638
          %644 = dma.hbm_to_vmem [thread:$0]  %s637, 4096, %s639, %s628, 64, 64, 4
        $region68: #{tpu_custom_call.1} parent=15 // pred_fallthru
          _
        // Predicated region
        $region69: #{tpu_custom_call.1} parent=15 // pred_check
          %p645 = pneg %p408
        $region70: #{tpu_custom_call.1} parent=15 // pred_check_branch
          %647 = sbr.rel (%p645) target = $region72
        $region71: #{tpu_custom_call.1} parent=15 // pred_region
          %p648 = scmp.lt.s32.totalorder %s46, 1
          %s649 = scalar_select %p648, %s46, 1
          %s650 = scalar_lea.vmem %s13, %s649
        $region72: #{tpu_custom_call.1} parent=15 // pred_fallthru
          _
      $region16: #{tpu_custom_call.1} parent=5 // pred_fallthru
        _
      %p651 = scmp.le.s32.totalorder 1, %s38
      %p652 = scmp.lt.s32.totalorder %s38, 5
      %p653 = pnand %p651, %p652
      %p654 = pneg %p653
      // Predicated region
      $region73: #{tpu_custom_call.1} parent=5 // pred_check
        _
      $region74: #{tpu_custom_call.1} parent=5 // pred_check_branch
        %656 = sbr.rel (%p653) target = $region76
      $region75: #{tpu_custom_call.1} parent=5 // pred_region
        %s657 = ssub.s32 %s38, 1
        %s658 = sand.u32 %s63, 1
        %s659 = scalar_lea.sflag [#allocation4], %s658
        %s660 = sand.u32 %s63, 1
        %s661 = smul.addr %s660, 8
        %s662 = scalar_lea.vmem [#allocation3], %s661
        // Predicated region
        $region77: #{tpu_custom_call.1} parent=75 // pred_check
          %p663 = pneg %p76
        $region78: #{tpu_custom_call.1} parent=75 // pred_check_branch
          %665 = sbr.rel (%p663) target = $region80
        $region79: #{tpu_custom_call.1} parent=75 // pred_region
          %666 = dma.done %s659, 128
        $region80: #{tpu_custom_call.1} parent=75 // pred_fallthru
          _
        %s667 = sand.u32 %s43, 1
        %s668 = scalar_lea.sflag [#allocation7], %s667
        %s669 = sand.u32 %s89, 1
        %s670 = smul.addr %s669, 8
        %s671 = scalar_lea.vmem [#allocation6], %s670
        // Predicated region
        $region81: #{tpu_custom_call.1} parent=75 // pred_check
          %p672 = pneg %p102
        $region82: #{tpu_custom_call.1} parent=75 // pred_check_branch
          %674 = sbr.rel (%p672) target = $region84
        $region83: #{tpu_custom_call.1} parent=75 // pred_region
          %675 = dma.done %s668, 128
        $region84: #{tpu_custom_call.1} parent=75 // pred_fallthru
          _
        %s676 = sand.u32 %s43, 1
        %s677 = scalar_lea.sflag [#allocation7], %s676
        %s678 = sand.u32 %s115, 1
        %s679 = scalar_lea.vmem [#allocation8], %s678
        // Predicated region
        $region85: #{tpu_custom_call.1} parent=75 // pred_check
          %p680 = pneg %p128
        $region86: #{tpu_custom_call.1} parent=75 // pred_check_branch
          %682 = sbr.rel (%p680) target = $region88
        $region87: #{tpu_custom_call.1} parent=75 // pred_region
          %683 = dma.done %s677, 16
        $region88: #{tpu_custom_call.1} parent=75 // pred_fallthru
          _
        %s684 = sand.u32 %s43, 1
        %s685 = scalar_lea.sflag [#allocation10], %s684
        %s686 = sand.u32 %s141, 1
        %s687 = scalar_lea.vmem [#allocation9], %s686
        // Predicated region
        $region89: #{tpu_custom_call.1} parent=75 // pred_check
          %p688 = pneg %p154
        $region90: #{tpu_custom_call.1} parent=75 // pred_check_branch
          %690 = sbr.rel (%p688) target = $region92
        $region91: #{tpu_custom_call.1} parent=75 // pred_region
          %691 = dma.done %s685, 16
        $region92: #{tpu_custom_call.1} parent=75 // pred_fallthru
          _
        %s692 = sand.u32 %s43, 1
        %s693 = scalar_lea.sflag [#allocation10], %s692
        %s694 = sand.u32 %s167, 1
        %s695 = smul.addr %s694, 192
        %s696 = scalar_lea.vmem [#allocation11], %s695
        // Predicated region
        $region93: #{tpu_custom_call.1} parent=75 // pred_check
          %p697 = pneg %p180
        $region94: #{tpu_custom_call.1} parent=75 // pred_check_branch
          %699 = sbr.rel (%p697) target = $region96
        $region95: #{tpu_custom_call.1} parent=75 // pred_region
          %700 = dma.done %s693, 3072
        $region96: #{tpu_custom_call.1} parent=75 // pred_fallthru
          _
        %s701 = sand.u32 %s43, 1
        %s702 = scalar_lea.sflag [#allocation13], %s701
        %s703 = sand.u32 %s219, 1
        %s704 = smul.addr %s703, 64
        %s705 = scalar_lea.vmem [#allocation12], %s704
        // Predicated region
        $region97: #{tpu_custom_call.1} parent=75 // pred_check
          %p706 = pneg %p232
        $region98: #{tpu_custom_call.1} parent=75 // pred_check_branch
          %708 = sbr.rel (%p706) target = $region100
        $region99: #{tpu_custom_call.1} parent=75 // pred_region
          %709 = dma.done %s702, 1024
        $region100: #{tpu_custom_call.1} parent=75 // pred_fallthru
          _
        %s710 = sand.u32 %s43, 1
        %s711 = scalar_lea.sflag [#allocation13], %s710
        %s712 = sand.u32 %s323, 1
        %s713 = smul.addr %s712, 256
        %s714 = scalar_lea.vmem [#allocation14], %s713
        // Predicated region
        $region101: #{tpu_custom_call.1} parent=75 // pred_check
          %p715 = pneg %p336
        $region102: #{tpu_custom_call.1} parent=75 // pred_check_branch
          %717 = sbr.rel (%p715) target = $region104
        $region103: #{tpu_custom_call.1} parent=75 // pred_region
          %718 = dma.done %s711, 4096
        $region104: #{tpu_custom_call.1} parent=75 // pred_fallthru
          _
        %s719 = sand.u32 %s375, 1
        %s720 = scalar_lea.sflag [#allocation16], %s719
        %s721 = sand.u32 %s375, 1
        %s722 = smul.addr %s721, 256
        %s723 = scalar_lea.vmem [#allocation15], %s722
        // Predicated region
        $region105: #{tpu_custom_call.1} parent=75 // pred_check
          %p724 = pneg %p388
        $region106: #{tpu_custom_call.1} parent=75 // pred_check_branch
          %726 = sbr.rel (%p724) target = $region108
        $region107: #{tpu_custom_call.1} parent=75 // pred_region
          %727 = dma.done %s720, 4096
        $region108: #{tpu_custom_call.1} parent=75 // pred_fallthru
          _
        %s728 = sand.u32 %s63, 1
        %s729 = scalar_lea.sflag [#allocation4], %s728
        %s730 = sand.u32 %s63, 1
        %s731 = smul.addr %s730, 8
        %s732 = scalar_lea.vmem [#allocation3], %s731
        %p733 = pneg %p76
        %p734 = pneg %p73
        %s735 = sand.u32 %s43, 1
        %s736 = scalar_lea.sflag [#allocation7], %s735
        %s737 = sand.u32 %s89, 1
        %s738 = smul.addr %s737, 8
        %s739 = scalar_lea.vmem [#allocation6], %s738
        %p740 = pneg %p102
        %p741 = pneg %p99
        %s742 = sand.u32 %s43, 1
        %s743 = scalar_lea.sflag [#allocation7], %s742
        %s744 = sand.u32 %s115, 1
        %s745 = scalar_lea.vmem [#allocation8], %s744
        %p746 = pneg %p128
        %p747 = pneg %p125
        %s748 = sand.u32 %s43, 1
        %s749 = scalar_lea.sflag [#allocation10], %s748
        %s750 = sand.u32 %s141, 1
        %s751 = scalar_lea.vmem [#allocation9], %s750
        %p752 = pneg %p154
        %p753 = pneg %p151
        %s754 = sand.u32 %s43, 1
        %s755 = scalar_lea.sflag [#allocation10], %s754
        %s756 = sand.u32 %s167, 1
        %s757 = smul.addr %s756, 192
        %s758 = scalar_lea.vmem [#allocation11], %s757
        %p759 = pneg %p180
        %p760 = pneg %p177
        %p761 = scmp.lt.s32.totalorder %s48, 1
        %s762 = scalar_select %p761, %s48, 1
        %s763 = smul.addr %s762, 3
        %s764 = scalar_lea.vmem %s5, %s763
        %p765 = pneg %p206
        %p766 = pneg %p203
        %s767 = sand.u32 %s43, 1
        %s768 = scalar_lea.sflag [#allocation13], %s767
        %s769 = sand.u32 %s219, 1
        %s770 = smul.addr %s769, 64
        %s771 = scalar_lea.vmem [#allocation12], %s770
        %p772 = pneg %p232
        %p773 = pneg %p229
        %p774 = scmp.lt.s32.totalorder %s48, 1
        %s775 = scalar_select %p774, %s48, 1
        %s776 = scalar_lea.vmem %s7, %s775
        %p777 = pneg %p258
        %p778 = pneg %p255
        %p779 = scmp.lt.s32.totalorder %s48, 1
        %s780 = scalar_select %p779, %s48, 1
        %s781 = scalar_lea.vmem %s8, %s780
        %p782 = pneg %p284
        %p783 = pneg %p281
        %p784 = scmp.lt.s32.totalorder %s48, 1
        %s785 = scalar_select %p784, %s48, 1
        %s786 = scalar_lea.vmem %s9, %s785
        %p787 = pneg %p310
        %p788 = pneg %p307
        %s789 = sand.u32 %s43, 1
        %s790 = scalar_lea.sflag [#allocation13], %s789
        %s791 = sand.u32 %s323, 1
        %s792 = smul.addr %s791, 256
        %s793 = scalar_lea.vmem [#allocation14], %s792
        %p794 = pneg %p336
        %p795 = pneg %p333
        %p796 = scmp.lt.s32.totalorder %s48, 1
        %s797 = scalar_select %p796, %s48, 1
        %s798 = smul.addr %s797, 4
        %s799 = scalar_lea.vmem %s11, %s798
        %p800 = pneg %p362
        %p801 = pneg %p359
        %s802 = sand.u32 %s375, 1
        %s803 = scalar_lea.sflag [#allocation16], %s802
        %s804 = sand.u32 %s375, 1
        %s805 = smul.addr %s804, 256
        %s806 = scalar_lea.vmem [#allocation15], %s805
        %p807 = pneg %p388
        %p808 = pneg %p385
        %p809 = scmp.lt.s32.totalorder %s48, 1
        %s810 = scalar_select %p809, %s48, 1
        %s811 = scalar_lea.vmem %s13, %s810
        %p812 = pneg %p414
        %p813 = pneg %p411
        %p814 = pneg %p440
        %p815 = pneg %p437
        %s816 = sand.u32 %s427, 1
        %s817 = scalar_lea.sflag [#allocation5], %s816
        %s818 = sand.u32 %s427, 1
        %s819 = smul.addr %s818, 8
        %s820 = scalar_lea.vmem [#allocation17], %s819
        %p821 = scmp.lt.s32.totalorder %s48, 1
        %s822 = scalar_select %p821, %s48, 1
        %s823 = smul.addr %s822, 3
        %s824 = scalar_lea.vmem %s5, %s823
        %p825 = scmp.lt.s32.totalorder %s48, 1
        %s826 = scalar_select %p825, %s48, 1
        %s827 = scalar_lea.vmem %s7, %s826
        %p828 = scmp.lt.s32.totalorder %s48, 1
        %s829 = scalar_select %p828, %s48, 1
        %s830 = scalar_lea.vmem %s8, %s829
        %p831 = scmp.lt.s32.totalorder %s48, 1
        %s832 = scalar_select %p831, %s48, 1
        %s833 = scalar_lea.vmem %s9, %s832
        %p834 = scmp.lt.s32.totalorder %s48, 1
        %s835 = scalar_select %p834, %s48, 1
        %s836 = smul.addr %s835, 4
        %s837 = scalar_lea.vmem %s11, %s836
        %p838 = scmp.lt.s32.totalorder %s48, 1
        %s839 = scalar_select %p838, %s48, 1
        %s840 = scalar_lea.vmem %s13, %s839
        %p842 = scmp.eq.s32.totalorder %s48, 0
        // Predicated region
        $region109: #{tpu_custom_call.1} parent=75 // pred_check
          %p843 = pneg %p842
        $region110: #{tpu_custom_call.1} parent=75 // pred_check_branch
          %845 = sbr.rel (%p843) target = $region112
        $region111: #{tpu_custom_call.1} parent=75 // pred_region
          %v846 = vld [vmem:[%s662] sm:$0xff]
          %847 = vst [vmem:[#allocation2] sm:$0xff] %v846
        $region112: #{tpu_custom_call.1} parent=75 // pred_fallthru
          _
        %v848 = vld [vmem:[#allocation2] sm:$0xff]
        %v849 = vld [vmem:[%s671] sm:$0xff]
        %850 = vadd.xlane.f32.xlu0 %v848
        %v851 = vpop.xlane.xlu0 %850
        %v852 = vrcp.pop 128.0
        %v853 = vmul.f32 %v851, %v852
        %v854 = vsub.f32 %v848, %v853
        %v855 = vmul.f32 %v854, %v854
        %856 = vadd.xlane.f32.xlu0 %v855
        %v857 = vpop.xlane.xlu0 %856
        %v858 = vmul.f32 %v857, %v852
        %v859 = vadd.f32 %v858, 1e-05
        %v860 = vrsqrt.pop %v859
        %v861 = vmul.f32 %v854, %v860
        %v862 = vld [vmem:[%s679] sm:$0x1]
        %v864 = vlaneseq
        %v865 = vshrl.u32 %v864, 7
        %v866 = vsub.s32 0, %v865
        %v867 = vrot.slane %v862, %v866
        %v869 = vmul.f32 %v861, %v867
        %v870 = vld [vmem:[%s687] sm:$0x1]
        %v872 = vlaneseq
        %v873 = vshrl.u32 %v872, 7
        %v874 = vsub.s32 0, %v873
        %v875 = vrot.slane %v870, %v874
        %v877 = vadd.f32 %v869, %v875
        %v878 = vpack.c.bf16 %v877, %v877
        %v879 = vld [vmem:[%s696] sm:$0xff]
        %v880 = vld [vmem:[%s696 + $0x8] sm:$0xf]
        %v881 = vld [vmem:[%s696 + $0xc] sm:$0xff]
        %v882 = vld [vmem:[%s696 + $0x14] sm:$0xf]
        %v883 = vld [vmem:[%s696 + $0x18] sm:$0xff]
        %v884 = vld [vmem:[%s696 + $0x20] sm:$0xf]
        %v885 = vld [vmem:[%s696 + $0x24] sm:$0xff]
        %v886 = vld [vmem:[%s696 + $0x2c] sm:$0xf]
        %v887 = vld [vmem:[%s696 + $0x30] sm:$0xff]
        %v888 = vld [vmem:[%s696 + $0x38] sm:$0xf]
        %v889 = vld [vmem:[%s696 + $0x3c] sm:$0xff]
        %v890 = vld [vmem:[%s696 + $0x44] sm:$0xf]
        %v891 = vld [vmem:[%s696 + $0x48] sm:$0xff]
        %v892 = vld [vmem:[%s696 + $0x50] sm:$0xf]
        %v893 = vld [vmem:[%s696 + $0x54] sm:$0xff]
        %v894 = vld [vmem:[%s696 + $0x5c] sm:$0xf]
        %v895 = vld [vmem:[%s696 + $0x60] sm:$0xff]
        %v896 = vld [vmem:[%s696 + $0x68] sm:$0xf]
        %v897 = vld [vmem:[%s696 + $0x6c] sm:$0xff]
        %v898 = vld [vmem:[%s696 + $0x74] sm:$0xf]
        %v899 = vld [vmem:[%s696 + $0x78] sm:$0xff]
        %v900 = vld [vmem:[%s696 + $0x80] sm:$0xf]
        %v901 = vld [vmem:[%s696 + $0x84] sm:$0xff]
        %v902 = vld [vmem:[%s696 + $0x8c] sm:$0xf]
        %v903 = vld [vmem:[%s696 + $0x90] sm:$0xff]
        %v904 = vld [vmem:[%s696 + $0x98] sm:$0xf]
        %v905 = vld [vmem:[%s696 + $0x9c] sm:$0xff]
        %v906 = vld [vmem:[%s696 + $0xa4] sm:$0xf]
        %v907 = vld [vmem:[%s696 + $0xa8] sm:$0xff]
        %v908 = vld [vmem:[%s696 + $0xb0] sm:$0xf]
        %v909 = vld [vmem:[%s696 + $0xb4] sm:$0xff]
        %v910 = vld [vmem:[%s696 + $0xbc] sm:$0xf]
        %v911 = vld [vmem:[%s824] sm:$0x7]
        %v913 = vlaneseq
        %v914 = vshrl.u32 %v913, 7
        %v915 = vsub.s32 0, %v914
        %v916 = vrot.slane %v911, %v915
        %v917 = vlaneseq
        %v918 = vshrl.u32 %v917, 7
        %v919 = vsub.s32 1, %v918
        %v920 = vrot.slane %v911, %v919
        %v921 = vlaneseq
        %v922 = vshrl.u32 %v921, 7
        %v923 = vsub.s32 2, %v922
        %v924 = vrot.slane %v911, %v923
        %v960 = vunpack.c.l.b16 %v879
        %v961 = vunpack.c.h.b16 %v879
        %v962 = vunpack.c.l.b16 %v880
        %v963 = vunpack.c.l.b16 %v881
        %v964 = vunpack.c.h.b16 %v881
        %v965 = vunpack.c.l.b16 %v882
        %v966 = vunpack.c.l.b16 %v883
        %v967 = vunpack.c.h.b16 %v883
        %v968 = vunpack.c.l.b16 %v884
        %v969 = vunpack.c.l.b16 %v885
        %v970 = vunpack.c.h.b16 %v885
        %v971 = vunpack.c.l.b16 %v886
        %v972 = vunpack.c.l.b16 %v887
        %v973 = vunpack.c.h.b16 %v887
        %v974 = vunpack.c.l.b16 %v888
        %v975 = vunpack.c.l.b16 %v889
        %v976 = vunpack.c.h.b16 %v889
        %v977 = vunpack.c.l.b16 %v890
        %v978 = vunpack.c.l.b16 %v891
        %v979 = vunpack.c.h.b16 %v891
        %v980 = vunpack.c.l.b16 %v892
        %v981 = vunpack.c.l.b16 %v893
        %v982 = vunpack.c.h.b16 %v893
        %v983 = vunpack.c.l.b16 %v894
        %v984 = vunpack.c.l.b16 %v895
        %v985 = vunpack.c.h.b16 %v895
        %v986 = vunpack.c.l.b16 %v896
        %v987 = vunpack.c.l.b16 %v897
        %v988 = vunpack.c.h.b16 %v897
        %v989 = vunpack.c.l.b16 %v898
        %v990 = vunpack.c.l.b16 %v899
        %v991 = vunpack.c.h.b16 %v899
        %v992 = vunpack.c.l.b16 %v900
        %v993 = vunpack.c.l.b16 %v901
        %v994 = vunpack.c.h.b16 %v901
        %v995 = vunpack.c.l.b16 %v902
        %v996 = vunpack.c.l.b16 %v903
        %v997 = vunpack.c.h.b16 %v903
        %v998 = vunpack.c.l.b16 %v904
        %v999 = vunpack.c.l.b16 %v905
        %v1000 = vunpack.c.h.b16 %v905
        %v1001 = vunpack.c.l.b16 %v906
        %v1002 = vunpack.c.l.b16 %v907
        %v1003 = vunpack.c.h.b16 %v907
        %v1004 = vunpack.c.l.b16 %v908
        %v1005 = vunpack.c.l.b16 %v909
        %v1006 = vunpack.c.h.b16 %v909
        %v1007 = vunpack.c.l.b16 %v910
        %v1008 = vpack.c.b16 %v963, %v960
        %v1009 = vpack.c.b16 %v964, %v961
        %v1010 = vpack.c.b16 %v965, %v962
        %v1011 = vpack.c.b16 %v969, %v966
        %v1012 = vpack.c.b16 %v970, %v967
        %v1013 = vpack.c.b16 %v971, %v968
        %v1014 = vpack.c.b16 %v975, %v972
        %v1015 = vpack.c.b16 %v976, %v973
        %v1016 = vpack.c.b16 %v977, %v974
        %v1017 = vpack.c.b16 %v981, %v978
        %v1018 = vpack.c.b16 %v982, %v979
        %v1019 = vpack.c.b16 %v983, %v980
        %v1020 = vpack.c.b16 %v987, %v984
        %v1021 = vpack.c.b16 %v988, %v985
        %v1022 = vpack.c.b16 %v989, %v986
        %v1023 = vpack.c.b16 %v993, %v990
        %v1024 = vpack.c.b16 %v994, %v991
        %v1025 = vpack.c.b16 %v995, %v992
        %v1026 = vpack.c.b16 %v999, %v996
        %v1027 = vpack.c.b16 %v1000, %v997
        %v1028 = vpack.c.b16 %v1001, %v998
        %v1029 = vpack.c.b16 %v1005, %v1002
        %v1030 = vpack.c.b16 %v1006, %v1003
        %v1031 = vpack.c.b16 %v1007, %v1004
        %1056 = vmatprep.subr.bf16.mxu0 %v1009
        %1057 = vmatpush1.bf16.msra.mxu0 %v1008
        %1058 = vmatprep.subr.bf16.mxu0 %v1012
        %1059 = vmatpush1.bf16.msra.mxu0 %v1011
        %1060 = vmatprep.subr.bf16.mxu0 %v1015
        %1061 = vmatpush1.bf16.msra.mxu0 %v1014
        %1062 = vmatprep.subr.bf16.mxu0 %v1018
        %1063 = vmatpush1.bf16.msra.mxu0 %v1017
        %1064 = vmatprep.subr.bf16.mxu0 %v1021
        %1065 = vmatpush1.bf16.msra.mxu0 %v1020
        %1066 = vmatprep.subr.bf16.mxu0 %v1024
        %1067 = vmatpush1.bf16.msra.mxu0 %v1023
        %1068 = vmatprep.subr.bf16.mxu0 %v1027
        %1069 = vmatpush1.bf16.msra.mxu0 %v1026
        %1070 = vmatprep.subr.bf16.mxu0 %v1030
        %1071 = vmatpush1.bf16.msra.mxu0 %v1029
        %1072 = vmatprep.subr.bf16.mxu0 0
        %1073 = vmatpush1.bf16.msra.mxu0 0
        %1074 = vmatprep.subr.bf16.mxu0 0
        %1075 = vmatpush1.bf16.msra.mxu0 0
        %1076 = vmatprep.subr.bf16.mxu0 0
        %1077 = vmatpush1.bf16.msra.mxu0 0
        %1078 = vmatprep.subr.bf16.mxu0 0
        %1079 = vmatpush1.bf16.msra.mxu0 0
        %1080 = vmatprep.subr.bf16.mxu0 0
        %1081 = vmatpush1.bf16.msra.mxu0 0
        %1082 = vmatprep.subr.bf16.mxu0 0
        %1083 = vmatpush1.bf16.msra.mxu0 0
        %1084 = vmatprep.subr.bf16.mxu0 0
        %1085 = vmatpush1.bf16.msra.mxu0 0
        %1086 = vmatprep.subr.bf16.mxu0 0
        %1087 = vmatpush1.bf16.msra.mxu0 0
        %1088 = vmatprep.mubr.bf16.mxu0 0
        %1089 = vmatmul.mubr.bf16.gmra.mrb[0].mxu0 %v878
        %v1090 = vpop.f32.mrb[0].mxu0
        %v1091 = vadd.f32 %v916, %v1090
        %v1092 = vpop.f32.mrb[0].mxu0
        %v1093 = vadd.f32 %v920, %v1092
        %v1094 = vpop.f32.mrb[0].mxu0
        %v1095 = vpop.f32.mrb[0].mxu0
        %1096 = vdwg.mxu0
        %1097 = vmatprep.subr.bf16.mxu0 0
        %1098 = vmatpush1.bf16.msra.mxu0 %v1010
        %1099 = vmatprep.subr.bf16.mxu0 0
        %1100 = vmatpush1.bf16.msra.mxu0 %v1013
        %1101 = vmatprep.subr.bf16.mxu0 0
        %1102 = vmatpush1.bf16.msra.mxu0 %v1016
        %1103 = vmatprep.subr.bf16.mxu0 0
        %1104 = vmatpush1.bf16.msra.mxu0 %v1019
        %1105 = vmatprep.subr.bf16.mxu0 0
        %1106 = vmatpush1.bf16.msra.mxu0 %v1022
        %1107 = vmatprep.subr.bf16.mxu0 0
        %1108 = vmatpush1.bf16.msra.mxu0 %v1025
        %1109 = vmatprep.subr.bf16.mxu0 0
        %1110 = vmatpush1.bf16.msra.mxu0 %v1028
        %1111 = vmatprep.subr.bf16.mxu0 0
        %1112 = vmatpush1.bf16.msra.mxu0 %v1031
        %1113 = vmatprep.subr.bf16.mxu0 0
        %1114 = vmatpush1.bf16.msra.mxu0 0
        %1115 = vmatprep.subr.bf16.mxu0 0
        %1116 = vmatpush1.bf16.msra.mxu0 0
        %1117 = vmatprep.subr.bf16.mxu0 0
        %1118 = vmatpush1.bf16.msra.mxu0 0
        %1119 = vmatprep.subr.bf16.mxu0 0
        %1120 = vmatpush1.bf16.msra.mxu0 0
        %1121 = vmatprep.subr.bf16.mxu0 0
        %1122 = vmatpush1.bf16.msra.mxu0 0
        %1123 = vmatprep.subr.bf16.mxu0 0
        %1124 = vmatpush1.bf16.msra.mxu0 0
        %1125 = vmatprep.subr.bf16.mxu0 0
        %1126 = vmatpush1.bf16.msra.mxu0 0
        %1127 = vmatprep.subr.bf16.mxu0 0
        %1128 = vmatpush1.bf16.msra.mxu0 0
        %1129 = vmatprep.mubr.bf16.mxu0 0
        %1130 = vmatmul.mubr.bf16.gmra.mrb[0].mxu0 %v878
        %v1131 = vpop.f32.mrb[0].mxu0
        %v1132 = vadd.f32 %v924, %v1131
        %v1133 = vpop.f32.mrb[0].mxu0
        %v1134 = vpop.f32.mrb[0].mxu0
        %v1135 = vpop.f32.mrb[0].mxu0
        %1136 = vdwg.mxu0
        %v1137 = vmul.f32 %v1091, 0.17677669
        %v1138 = vpack.c.bf16 %v1132, %v1132
        %vm1139 = vcmask 261120
        %v1141 = vsel %vm1139, %v1137, 0
        %v1144 = vsel %vm1139, %v1093, 0
        %1146 = vmatprep.subr.mxu0 0.0
        %1147 = vmatpush1.xpose.msra.mxu0 %v1144
        %1148 = vmatprep.subr.mxu0 0.0
        %1149 = vmatpush1.xpose.msra.mxu0 0.0
        %1150 = vmatprep.subr.mxu0 0.0
        %1151 = vmatpush1.xpose.msra.mxu0 0.0
        %1152 = vmatprep.subr.mxu0 0.0
        %1153 = vmatpush1.xpose.msra.mxu0 0.0
        %1154 = vmatprep.subr.mxu0 0.0
        %1155 = vmatpush1.xpose.msra.mxu0 0.0
        %1156 = vmatprep.subr.mxu0 0.0
        %1157 = vmatpush1.xpose.msra.mxu0 0.0
        %1158 = vmatprep.subr.mxu0 0.0
        %1159 = vmatpush1.xpose.msra.mxu0 0.0
        %1160 = vmatprep.subr.mxu0 0.0
        %1161 = vmatpush1.xpose.msra.mxu0 0.0
        %1162 = vmatprep.subr.mxu0 0.0
        %1163 = vmatpush1.xpose.msra.mxu0 0.0
        %1164 = vmatprep.subr.mxu0 0.0
        %1165 = vmatpush1.xpose.msra.mxu0 0.0
        %1166 = vmatprep.subr.mxu0 0.0
        %1167 = vmatpush1.xpose.msra.mxu0 0.0
        %1168 = vmatprep.subr.mxu0 0.0
        %1169 = vmatpush1.xpose.msra.mxu0 0.0
        %1170 = vmatprep.subr.mxu0 0.0
        %1171 = vmatpush1.xpose.msra.mxu0 0.0
        %1172 = vmatprep.subr.mxu0 0.0
        %1173 = vmatpush1.xpose.msra.mxu0 0.0
        %1174 = vmatprep.subr.mxu0 0.0
        %1175 = vmatpush1.xpose.msra.mxu0 0.0
        %1176 = vmatprep.subr.mxu0 0.0
        %1177 = vmatpush1.xpose.msra.mxu0 0.0
        %1178 = vmatprep.subr.mxu0 0.0
        %1179 = vmatpush1.xpose.msra.mxu0 0.0
        %1180 = vmatprep.subr.mxu0 0.0
        %1181 = vmatpush1.xpose.msra.mxu0 0.0
        %1182 = vmatprep.subr.mxu0 0.0
        %1183 = vmatpush1.xpose.msra.mxu0 0.0
        %1184 = vmatprep.subr.mxu0 0.0
        %1185 = vmatpush1.xpose.msra.mxu0 0.0
        %1186 = vmatprep.subr.mxu0 0.0
        %1187 = vmatpush1.xpose.msra.mxu0 0.0
        %1188 = vmatprep.subr.mxu0 0.0
        %1189 = vmatpush1.xpose.msra.mxu0 0.0
        %1190 = vmatprep.subr.mxu0 0.0
        %1191 = vmatpush1.xpose.msra.mxu0 0.0
        %1192 = vmatprep.subr.mxu0 0.0
        %1193 = vmatpush1.xpose.msra.mxu0 0.0
        %1194 = vmatprep.subr.mxu0 0.0
        %1195 = vmatpush1.xpose.msra.mxu0 0.0
        %1196 = vmatprep.subr.mxu0 0.0
        %1197 = vmatpush1.xpose.msra.mxu0 0.0
        %1198 = vmatprep.subr.mxu0 0.0
        %1199 = vmatpush1.xpose.msra.mxu0 0.0
        %1200 = vmatprep.subr.mxu0 0.0
        %1201 = vmatpush1.xpose.msra.mxu0 0.0
        %1202 = vmatprep.subr.mxu0 0.0
        %1203 = vmatpush1.xpose.msra.mxu0 0.0
        %1204 = vmatprep.subr.mxu0 0.0
        %1205 = vmatpush1.xpose.msra.mxu0 0.0
        %1206 = vmatprep.subr.mxu0 0.0
        %1207 = vmatpush1.xpose.msra.mxu0 0.0
        %1208 = vmatprep.subr.mxu0 0.0
        %1209 = vmatpush1.xpose.msra.mxu0 0.0
        %1210 = vmatprep.mubr.f32.mxu0 0.0
        %1211 = vmatmul.mubr.f32.gmra.mrb[0].mxu0 %v1141
        %v1212 = vpop.f32.mrb[0].mxu0
        %v1213 = vadd.f32 %v849, %v1212
        %v1214 = vpop.f32.mrb[0].mxu0
        %1215 = vdwg.mxu0
        %vm1216 = vcmask 64512
        %v1217 = vsel %vm1216, %v1213, -inf
        %1218 = vmax.xlane.f32.xlu0 %v1217
        %v1219 = vpop.xlane.xlu0 %1218
        %v1220 = vsub.f32 %v1213, %v1219
        %v1221 = vmul.f32 %v1220, 1.442695
        %v1222 = vpow.pop %v1221
        %v1223 = vsel %vm1216, %v1222, 0.0
        %1224 = vadd.xlane.f32.xlu0 %v1223
        %v1225 = vpop.xlane.xlu0 %1224
        %v1226 = vrcp.pop %v1225
        %v1227 = vmul.f32 %v1222, %v1226
        %v1228 = vpack.c.bf16 %v1227, %v1227
        %v1230 = vsel %vm1216, %v1228, 0
        %vm1232 = vcmask 1043456
        %v1234 = vsel %vm1232, %v1138, 0
        %1236 = vmatprep.subr.bf16.mxu0 0
        %1237 = vmatpush1.bf16.msra.mxu0 %v1234
        %1238 = vmatprep.subr.bf16.mxu0 0
        %1239 = vmatpush1.bf16.msra.mxu0 0
        %1240 = vmatprep.subr.bf16.mxu0 0
        %1241 = vmatpush1.bf16.msra.mxu0 0
        %1242 = vmatprep.subr.bf16.mxu0 0
        %1243 = vmatpush1.bf16.msra.mxu0 0
        %1244 = vmatprep.subr.bf16.mxu0 0
        %1245 = vmatpush1.bf16.msra.mxu0 0
        %1246 = vmatprep.subr.bf16.mxu0 0
        %1247 = vmatpush1.bf16.msra.mxu0 0
        %1248 = vmatprep.subr.bf16.mxu0 0
        %1249 = vmatpush1.bf16.msra.mxu0 0
        %1250 = vmatprep.subr.bf16.mxu0 0
        %1251 = vmatpush1.bf16.msra.mxu0 0
        %1252 = vmatprep.subr.bf16.mxu0 0
        %1253 = vmatpush1.bf16.msra.mxu0 0
        %1254 = vmatprep.subr.bf16.mxu0 0
        %1255 = vmatpush1.bf16.msra.mxu0 0
        %1256 = vmatprep.subr.bf16.mxu0 0
        %1257 = vmatpush1.bf16.msra.mxu0 0
        %1258 = vmatprep.subr.bf16.mxu0 0
        %1259 = vmatpush1.bf16.msra.mxu0 0
        %1260 = vmatprep.subr.bf16.mxu0 0
        %1261 = vmatpush1.bf16.msra.mxu0 0
        %1262 = vmatprep.subr.bf16.mxu0 0
        %1263 = vmatpush1.bf16.msra.mxu0 0
        %1264 = vmatprep.subr.bf16.mxu0 0
        %1265 = vmatpush1.bf16.msra.mxu0 0
        %1266 = vmatprep.subr.bf16.mxu0 0
        %1267 = vmatpush1.bf16.msra.mxu0 0
        %1268 = vmatprep.mubr.bf16.mxu0 0
        %1269 = vmatmul.mubr.bf16.gmra.mrb[0].mxu0 %v1230
        %v1270 = vpop.f32.mrb[0].mxu0
        %v1271 = vadd.f32 0.0, %v1270
        %v1272 = vpop.f32.mrb[0].mxu0
        %v1273 = vpop.f32.mrb[0].mxu0
        %v1274 = vpop.f32.mrb[0].mxu0
        %1275 = vdwg.mxu0
        %1276 = vrot.lane.b32.xlu0 %v1137, 96
        %v1277 = vpop.permute.xlu0 %1276
        %1278 = vrot.lane.b32.xlu0 %v1093, 96
        %v1279 = vpop.permute.xlu0 %1278
        %v1280 = vsel %vm1139, %v1277, 0
        %v1282 = vsel %vm1139, %v1279, 0
        %1284 = vmatprep.subr.mxu0 0.0
        %1285 = vmatpush1.xpose.msra.mxu0 %v1282
        %1286 = vmatprep.subr.mxu0 0.0
        %1287 = vmatpush1.xpose.msra.mxu0 0.0
        %1288 = vmatprep.subr.mxu0 0.0
        %1289 = vmatpush1.xpose.msra.mxu0 0.0
        %1290 = vmatprep.subr.mxu0 0.0
        %1291 = vmatpush1.xpose.msra.mxu0 0.0
        %1292 = vmatprep.subr.mxu0 0.0
        %1293 = vmatpush1.xpose.msra.mxu0 0.0
        %1294 = vmatprep.subr.mxu0 0.0
        %1295 = vmatpush1.xpose.msra.mxu0 0.0
        %1296 = vmatprep.subr.mxu0 0.0
        %1297 = vmatpush1.xpose.msra.mxu0 0.0
        %1298 = vmatprep.subr.mxu0 0.0
        %1299 = vmatpush1.xpose.msra.mxu0 0.0
        %1300 = vmatprep.subr.mxu0 0.0
        %1301 = vmatpush1.xpose.msra.mxu0 0.0
        %1302 = vmatprep.subr.mxu0 0.0
        %1303 = vmatpush1.xpose.msra.mxu0 0.0
        %1304 = vmatprep.subr.mxu0 0.0
        %1305 = vmatpush1.xpose.msra.mxu0 0.0
        %1306 = vmatprep.subr.mxu0 0.0
        %1307 = vmatpush1.xpose.msra.mxu0 0.0
        %1308 = vmatprep.subr.mxu0 0.0
        %1309 = vmatpush1.xpose.msra.mxu0 0.0
        %1310 = vmatprep.subr.mxu0 0.0
        %1311 = vmatpush1.xpose.msra.mxu0 0.0
        %1312 = vmatprep.subr.mxu0 0.0
        %1313 = vmatpush1.xpose.msra.mxu0 0.0
        %1314 = vmatprep.subr.mxu0 0.0
        %1315 = vmatpush1.xpose.msra.mxu0 0.0
        %1316 = vmatprep.subr.mxu0 0.0
        %1317 = vmatpush1.xpose.msra.mxu0 0.0
        %1318 = vmatprep.subr.mxu0 0.0
        %1319 = vmatpush1.xpose.msra.mxu0 0.0
        %1320 = vmatprep.subr.mxu0 0.0
        %1321 = vmatpush1.xpose.msra.mxu0 0.0
        %1322 = vmatprep.subr.mxu0 0.0
        %1323 = vmatpush1.xpose.msra.mxu0 0.0
        %1324 = vmatprep.subr.mxu0 0.0
        %1325 = vmatpush1.xpose.msra.mxu0 0.0
        %1326 = vmatprep.subr.mxu0 0.0
        %1327 = vmatpush1.xpose.msra.mxu0 0.0
        %1328 = vmatprep.subr.mxu0 0.0
        %1329 = vmatpush1.xpose.msra.mxu0 0.0
        %1330 = vmatprep.subr.mxu0 0.0
        %1331 = vmatpush1.xpose.msra.mxu0 0.0
        %1332 = vmatprep.subr.mxu0 0.0
        %1333 = vmatpush1.xpose.msra.mxu0 0.0
        %1334 = vmatprep.subr.mxu0 0.0
        %1335 = vmatpush1.xpose.msra.mxu0 0.0
        %1336 = vmatprep.subr.mxu0 0.0
        %1337 = vmatpush1.xpose.msra.mxu0 0.0
        %1338 = vmatprep.subr.mxu0 0.0
        %1339 = vmatpush1.xpose.msra.mxu0 0.0
        %1340 = vmatprep.subr.mxu0 0.0
        %1341 = vmatpush1.xpose.msra.mxu0 0.0
        %1342 = vmatprep.subr.mxu0 0.0
        %1343 = vmatpush1.xpose.msra.mxu0 0.0
        %1344 = vmatprep.subr.mxu0 0.0
        %1345 = vmatpush1.xpose.msra.mxu0 0.0
        %1346 = vmatprep.subr.mxu0 0.0
        %1347 = vmatpush1.xpose.msra.mxu0 0.0
        %1348 = vmatprep.mubr.f32.mxu0 0.0
        %1349 = vmatmul.mubr.f32.gmra.mrb[0].mxu0 %v1280
        %v1350 = vpop.f32.mrb[0].mxu0
        %v1351 = vadd.f32 %v849, %v1350
        %v1352 = vpop.f32.mrb[0].mxu0
        %1353 = vdwg.mxu0
        %v1354 = vsel %vm1216, %v1351, -inf
        %1355 = vmax.xlane.f32.xlu0 %v1354
        %v1356 = vpop.xlane.xlu0 %1355
        %v1357 = vsub.f32 %v1351, %v1356
        %v1358 = vmul.f32 %v1357, 1.442695
        %v1359 = vpow.pop %v1358
        %v1360 = vsel %vm1216, %v1359, 0.0
        %1361 = vadd.xlane.f32.xlu0 %v1360
        %v1362 = vpop.xlane.xlu0 %1361
        %v1363 = vrcp.pop %v1362
        %v1364 = vmul.f32 %v1359, %v1363
        %v1365 = vpack.c.bf16 %v1364, %v1364
        %1367 = vrot.lane.b32.xlu0 %v1138, 96
        %v1368 = vpop.permute.xlu0 %1367
        %v1370 = vsel %vm1216, %v1365, 0
        %v1373 = vsel %vm1232, %v1368, 0
        %1375 = vmatprep.subr.bf16.mxu0 0
        %1376 = vmatpush1.bf16.msra.mxu0 %v1373
        %1377 = vmatprep.subr.bf16.mxu0 0
        %1378 = vmatpush1.bf16.msra.mxu0 0
        %1379 = vmatprep.subr.bf16.mxu0 0
        %1380 = vmatpush1.bf16.msra.mxu0 0
        %1381 = vmatprep.subr.bf16.mxu0 0
        %1382 = vmatpush1.bf16.msra.mxu0 0
        %1383 = vmatprep.subr.bf16.mxu0 0
        %1384 = vmatpush1.bf16.msra.mxu0 0
        %1385 = vmatprep.subr.bf16.mxu0 0
        %1386 = vmatpush1.bf16.msra.mxu0 0
        %1387 = vmatprep.subr.bf16.mxu0 0
        %1388 = vmatpush1.bf16.msra.mxu0 0
        %1389 = vmatprep.subr.bf16.mxu0 0
        %1390 = vmatpush1.bf16.msra.mxu0 0
        %1391 = vmatprep.subr.bf16.mxu0 0
        %1392 = vmatpush1.bf16.msra.mxu0 0
        %1393 = vmatprep.subr.bf16.mxu0 0
        %1394 = vmatpush1.bf16.msra.mxu0 0
        %1395 = vmatprep.subr.bf16.mxu0 0
        %1396 = vmatpush1.bf16.msra.mxu0 0
        %1397 = vmatprep.subr.bf16.mxu0 0
        %1398 = vmatpush1.bf16.msra.mxu0 0
        %1399 = vmatprep.subr.bf16.mxu0 0
        %1400 = vmatpush1.bf16.msra.mxu0 0
        %1401 = vmatprep.subr.bf16.mxu0 0
        %1402 = vmatpush1.bf16.msra.mxu0 0
        %1403 = vmatprep.subr.bf16.mxu0 0
        %1404 = vmatpush1.bf16.msra.mxu0 0
        %1405 = vmatprep.subr.bf16.mxu0 0
        %1406 = vmatpush1.bf16.msra.mxu0 0
        %1407 = vmatprep.mubr.bf16.mxu0 0
        %1408 = vmatmul.mubr.bf16.gmra.mrb[0].mxu0 %v1370
        %v1409 = vpop.f32.mrb[0].mxu0
        %v1410 = vadd.f32 0.0, %v1409
        %v1411 = vpop.f32.mrb[0].mxu0
        %v1412 = vpop.f32.mrb[0].mxu0
        %v1413 = vpop.f32.mrb[0].mxu0
        %1414 = vdwg.mxu0
        %1415 = vrot.lane.b32.xlu0 %v1137, 64
        %v1416 = vpop.permute.xlu0 %1415
        %1417 = vrot.lane.b32.xlu0 %v1093, 64
        %v1418 = vpop.permute.xlu0 %1417
        %v1419 = vsel %vm1139, %v1416, 0
        %v1421 = vsel %vm1139, %v1418, 0
        %1423 = vmatprep.subr.mxu0 0.0
        %1424 = vmatpush1.xpose.msra.mxu0 %v1421
        %1425 = vmatprep.subr.mxu0 0.0
        %1426 = vmatpush1.xpose.msra.mxu0 0.0
        %1427 = vmatprep.subr.mxu0 0.0
        %1428 = vmatpush1.xpose.msra.mxu0 0.0
        %1429 = vmatprep.subr.mxu0 0.0
        %1430 = vmatpush1.xpose.msra.mxu0 0.0
        %1431 = vmatprep.subr.mxu0 0.0
        %1432 = vmatpush1.xpose.msra.mxu0 0.0
        %1433 = vmatprep.subr.mxu0 0.0
        %1434 = vmatpush1.xpose.msra.mxu0 0.0
        %1435 = vmatprep.subr.mxu0 0.0
        %1436 = vmatpush1.xpose.msra.mxu0 0.0
        %1437 = vmatprep.subr.mxu0 0.0
        %1438 = vmatpush1.xpose.msra.mxu0 0.0
        %1439 = vmatprep.subr.mxu0 0.0
        %1440 = vmatpush1.xpose.msra.mxu0 0.0
        %1441 = vmatprep.subr.mxu0 0.0
        %1442 = vmatpush1.xpose.msra.mxu0 0.0
        %1443 = vmatprep.subr.mxu0 0.0
        %1444 = vmatpush1.xpose.msra.mxu0 0.0
        %1445 = vmatprep.subr.mxu0 0.0
        %1446 = vmatpush1.xpose.msra.mxu0 0.0
        %1447 = vmatprep.subr.mxu0 0.0
        %1448 = vmatpush1.xpose.msra.mxu0 0.0
        %1449 = vmatprep.subr.mxu0 0.0
        %1450 = vmatpush1.xpose.msra.mxu0 0.0
        %1451 = vmatprep.subr.mxu0 0.0
        %1452 = vmatpush1.xpose.msra.mxu0 0.0
        %1453 = vmatprep.subr.mxu0 0.0
        %1454 = vmatpush1.xpose.msra.mxu0 0.0
        %1455 = vmatprep.subr.mxu0 0.0
        %1456 = vmatpush1.xpose.msra.mxu0 0.0
        %1457 = vmatprep.subr.mxu0 0.0
        %1458 = vmatpush1.xpose.msra.mxu0 0.0
        %1459 = vmatprep.subr.mxu0 0.0
        %1460 = vmatpush1.xpose.msra.mxu0 0.0
        %1461 = vmatprep.subr.mxu0 0.0
        %1462 = vmatpush1.xpose.msra.mxu0 0.0
        %1463 = vmatprep.subr.mxu0 0.0
        %1464 = vmatpush1.xpose.msra.mxu0 0.0
        %1465 = vmatprep.subr.mxu0 0.0
        %1466 = vmatpush1.xpose.msra.mxu0 0.0
        %1467 = vmatprep.subr.mxu0 0.0
        %1468 = vmatpush1.xpose.msra.mxu0 0.0
        %1469 = vmatprep.subr.mxu0 0.0
        %1470 = vmatpush1.xpose.msra.mxu0 0.0
        %1471 = vmatprep.subr.mxu0 0.0
        %1472 = vmatpush1.xpose.msra.mxu0 0.0
        %1473 = vmatprep.subr.mxu0 0.0
        %1474 = vmatpush1.xpose.msra.mxu0 0.0
        %1475 = vmatprep.subr.mxu0 0.0
        %1476 = vmatpush1.xpose.msra.mxu0 0.0
        %1477 = vmatprep.subr.mxu0 0.0
        %1478 = vmatpush1.xpose.msra.mxu0 0.0
        %1479 = vmatprep.subr.mxu0 0.0
        %1480 = vmatpush1.xpose.msra.mxu0 0.0
        %1481 = vmatprep.subr.mxu0 0.0
        %1482 = vmatpush1.xpose.msra.mxu0 0.0
        %1483 = vmatprep.subr.mxu0 0.0
        %1484 = vmatpush1.xpose.msra.mxu0 0.0
        %1485 = vmatprep.subr.mxu0 0.0
        %1486 = vmatpush1.xpose.msra.mxu0 0.0
        %1487 = vmatprep.mubr.f32.mxu0 0.0
        %1488 = vmatmul.mubr.f32.gmra.mrb[0].mxu0 %v1419
        %v1489 = vpop.f32.mrb[0].mxu0
        %v1490 = vadd.f32 %v849, %v1489
        %v1491 = vpop.f32.mrb[0].mxu0
        %1492 = vdwg.mxu0
        %v1493 = vsel %vm1216, %v1490, -inf
        %1494 = vmax.xlane.f32.xlu0 %v1493
        %v1495 = vpop.xlane.xlu0 %1494
        %v1496 = vsub.f32 %v1490, %v1495
        %v1497 = vmul.f32 %v1496, 1.442695
        %v1498 = vpow.pop %v1497
        %v1499 = vsel %vm1216, %v1498, 0.0
        %1500 = vadd.xlane.f32.xlu0 %v1499
        %v1501 = vpop.xlane.xlu0 %1500
        %v1502 = vrcp.pop %v1501
        %v1503 = vmul.f32 %v1498, %v1502
        %v1504 = vpack.c.bf16 %v1503, %v1503
        %1505 = vrot.lane.b32.xlu0 %v1138, 64
        %v1506 = vpop.permute.xlu0 %1505
        %v1508 = vsel %vm1216, %v1504, 0
        %v1511 = vsel %vm1232, %v1506, 0
        %1513 = vmatprep.subr.bf16.mxu0 0
        %1514 = vmatpush1.bf16.msra.mxu0 %v1511
        %1515 = vmatprep.subr.bf16.mxu0 0
        %1516 = vmatpush1.bf16.msra.mxu0 0
        %1517 = vmatprep.subr.bf16.mxu0 0
        %1518 = vmatpush1.bf16.msra.mxu0 0
        %1519 = vmatprep.subr.bf16.mxu0 0
        %1520 = vmatpush1.bf16.msra.mxu0 0
        %1521 = vmatprep.subr.bf16.mxu0 0
        %1522 = vmatpush1.bf16.msra.mxu0 0
        %1523 = vmatprep.subr.bf16.mxu0 0
        %1524 = vmatpush1.bf16.msra.mxu0 0
        %1525 = vmatprep.subr.bf16.mxu0 0
        %1526 = vmatpush1.bf16.msra.mxu0 0
        %1527 = vmatprep.subr.bf16.mxu0 0
        %1528 = vmatpush1.bf16.msra.mxu0 0
        %1529 = vmatprep.subr.bf16.mxu0 0
        %1530 = vmatpush1.bf16.msra.mxu0 0
        %1531 = vmatprep.subr.bf16.mxu0 0
        %1532 = vmatpush1.bf16.msra.mxu0 0
        %1533 = vmatprep.subr.bf16.mxu0 0
        %1534 = vmatpush1.bf16.msra.mxu0 0
        %1535 = vmatprep.subr.bf16.mxu0 0
        %1536 = vmatpush1.bf16.msra.mxu0 0
        %1537 = vmatprep.subr.bf16.mxu0 0
        %1538 = vmatpush1.bf16.msra.mxu0 0
        %1539 = vmatprep.subr.bf16.mxu0 0
        %1540 = vmatpush1.bf16.msra.mxu0 0
        %1541 = vmatprep.subr.bf16.mxu0 0
        %1542 = vmatpush1.bf16.msra.mxu0 0
        %1543 = vmatprep.subr.bf16.mxu0 0
        %1544 = vmatpush1.bf16.msra.mxu0 0
        %1545 = vmatprep.mubr.bf16.mxu0 0
        %1546 = vmatmul.mubr.bf16.gmra.mrb[0].mxu0 %v1508
        %v1547 = vpop.f32.mrb[0].mxu0
        %v1548 = vadd.f32 0.0, %v1547
        %v1549 = vpop.f32.mrb[0].mxu0
        %v1550 = vpop.f32.mrb[0].mxu0
        %v1551 = vpop.f32.mrb[0].mxu0
        %1552 = vdwg.mxu0
        %1553 = vrot.lane.b32.xlu0 %v1137, 32
        %v1554 = vpop.permute.xlu0 %1553
        %1555 = vrot.lane.b32.xlu0 %v1093, 32
        %v1556 = vpop.permute.xlu0 %1555
        %v1557 = vsel %vm1139, %v1554, 0
        %v1559 = vsel %vm1139, %v1556, 0
        %1561 = vmatprep.subr.mxu0 0.0
        %1562 = vmatpush1.xpose.msra.mxu0 %v1559
        %1563 = vmatprep.subr.mxu0 0.0
        %1564 = vmatpush1.xpose.msra.mxu0 0.0
        %1565 = vmatprep.subr.mxu0 0.0
        %1566 = vmatpush1.xpose.msra.mxu0 0.0
        %1567 = vmatprep.subr.mxu0 0.0
        %1568 = vmatpush1.xpose.msra.mxu0 0.0
        %1569 = vmatprep.subr.mxu0 0.0
        %1570 = vmatpush1.xpose.msra.mxu0 0.0
        %1571 = vmatprep.subr.mxu0 0.0
        %1572 = vmatpush1.xpose.msra.mxu0 0.0
        %1573 = vmatprep.subr.mxu0 0.0
        %1574 = vmatpush1.xpose.msra.mxu0 0.0
        %1575 = vmatprep.subr.mxu0 0.0
        %1576 = vmatpush1.xpose.msra.mxu0 0.0
        %1577 = vmatprep.subr.mxu0 0.0
        %1578 = vmatpush1.xpose.msra.mxu0 0.0
        %1579 = vmatprep.subr.mxu0 0.0
        %1580 = vmatpush1.xpose.msra.mxu0 0.0
        %1581 = vmatprep.subr.mxu0 0.0
        %1582 = vmatpush1.xpose.msra.mxu0 0.0
        %1583 = vmatprep.subr.mxu0 0.0
        %1584 = vmatpush1.xpose.msra.mxu0 0.0
        %1585 = vmatprep.subr.mxu0 0.0
        %1586 = vmatpush1.xpose.msra.mxu0 0.0
        %1587 = vmatprep.subr.mxu0 0.0
        %1588 = vmatpush1.xpose.msra.mxu0 0.0
        %1589 = vmatprep.subr.mxu0 0.0
        %1590 = vmatpush1.xpose.msra.mxu0 0.0
        %1591 = vmatprep.subr.mxu0 0.0
        %1592 = vmatpush1.xpose.msra.mxu0 0.0
        %1593 = vmatprep.subr.mxu0 0.0
        %1594 = vmatpush1.xpose.msra.mxu0 0.0
        %1595 = vmatprep.subr.mxu0 0.0
        %1596 = vmatpush1.xpose.msra.mxu0 0.0
        %1597 = vmatprep.subr.mxu0 0.0
        %1598 = vmatpush1.xpose.msra.mxu0 0.0
        %1599 = vmatprep.subr.mxu0 0.0
        %1600 = vmatpush1.xpose.msra.mxu0 0.0
        %1601 = vmatprep.subr.mxu0 0.0
        %1602 = vmatpush1.xpose.msra.mxu0 0.0
        %1603 = vmatprep.subr.mxu0 0.0
        %1604 = vmatpush1.xpose.msra.mxu0 0.0
        %1605 = vmatprep.subr.mxu0 0.0
        %1606 = vmatpush1.xpose.msra.mxu0 0.0
        %1607 = vmatprep.subr.mxu0 0.0
        %1608 = vmatpush1.xpose.msra.mxu0 0.0
        %1609 = vmatprep.subr.mxu0 0.0
        %1610 = vmatpush1.xpose.msra.mxu0 0.0
        %1611 = vmatprep.subr.mxu0 0.0
        %1612 = vmatpush1.xpose.msra.mxu0 0.0
        %1613 = vmatprep.subr.mxu0 0.0
        %1614 = vmatpush1.xpose.msra.mxu0 0.0
        %1615 = vmatprep.subr.mxu0 0.0
        %1616 = vmatpush1.xpose.msra.mxu0 0.0
        %1617 = vmatprep.subr.mxu0 0.0
        %1618 = vmatpush1.xpose.msra.mxu0 0.0
        %1619 = vmatprep.subr.mxu0 0.0
        %1620 = vmatpush1.xpose.msra.mxu0 0.0
        %1621 = vmatprep.subr.mxu0 0.0
        %1622 = vmatpush1.xpose.msra.mxu0 0.0
        %1623 = vmatprep.subr.mxu0 0.0
        %1624 = vmatpush1.xpose.msra.mxu0 0.0
        %1625 = vmatprep.mubr.f32.mxu0 0.0
        %1626 = vmatmul.mubr.f32.gmra.mrb[0].mxu0 %v1557
        %v1627 = vpop.f32.mrb[0].mxu0
        %v1628 = vadd.f32 %v849, %v1627
        %v1629 = vpop.f32.mrb[0].mxu0
        %1630 = vdwg.mxu0
        %v1631 = vsel %vm1216, %v1628, -inf
        %1632 = vmax.xlane.f32.xlu0 %v1631
        %v1633 = vpop.xlane.xlu0 %1632
        %v1634 = vsub.f32 %v1628, %v1633
        %v1635 = vmul.f32 %v1634, 1.442695
        %v1636 = vpow.pop %v1635
        %v1637 = vsel %vm1216, %v1636, 0.0
        %1638 = vadd.xlane.f32.xlu0 %v1637
        %v1639 = vpop.xlane.xlu0 %1638
        %v1640 = vrcp.pop %v1639
        %v1641 = vmul.f32 %v1636, %v1640
        %v1642 = vpack.c.bf16 %v1641, %v1641
        %1643 = vrot.lane.b32.xlu0 %v1138, 32
        %v1644 = vpop.permute.xlu0 %1643
        %v1646 = vsel %vm1216, %v1642, 0
        %v1649 = vsel %vm1232, %v1644, 0
        %1651 = vmatprep.subr.bf16.mxu0 0
        %1652 = vmatpush1.bf16.msra.mxu0 %v1649
        %1653 = vmatprep.subr.bf16.mxu0 0
        %1654 = vmatpush1.bf16.msra.mxu0 0
        %1655 = vmatprep.subr.bf16.mxu0 0
        %1656 = vmatpush1.bf16.msra.mxu0 0
        %1657 = vmatprep.subr.bf16.mxu0 0
        %1658 = vmatpush1.bf16.msra.mxu0 0
        %1659 = vmatprep.subr.bf16.mxu0 0
        %1660 = vmatpush1.bf16.msra.mxu0 0
        %1661 = vmatprep.subr.bf16.mxu0 0
        %1662 = vmatpush1.bf16.msra.mxu0 0
        %1663 = vmatprep.subr.bf16.mxu0 0
        %1664 = vmatpush1.bf16.msra.mxu0 0
        %1665 = vmatprep.subr.bf16.mxu0 0
        %1666 = vmatpush1.bf16.msra.mxu0 0
        %1667 = vmatprep.subr.bf16.mxu0 0
        %1668 = vmatpush1.bf16.msra.mxu0 0
        %1669 = vmatprep.subr.bf16.mxu0 0
        %1670 = vmatpush1.bf16.msra.mxu0 0
        %1671 = vmatprep.subr.bf16.mxu0 0
        %1672 = vmatpush1.bf16.msra.mxu0 0
        %1673 = vmatprep.subr.bf16.mxu0 0
        %1674 = vmatpush1.bf16.msra.mxu0 0
        %1675 = vmatprep.subr.bf16.mxu0 0
        %1676 = vmatpush1.bf16.msra.mxu0 0
        %1677 = vmatprep.subr.bf16.mxu0 0
        %1678 = vmatpush1.bf16.msra.mxu0 0
        %1679 = vmatprep.subr.bf16.mxu0 0
        %1680 = vmatpush1.bf16.msra.mxu0 0
        %1681 = vmatprep.subr.bf16.mxu0 0
        %1682 = vmatpush1.bf16.msra.mxu0 0
        %1683 = vmatprep.mubr.bf16.mxu0 0
        %1684 = vmatmul.mubr.bf16.gmra.mrb[0].mxu0 %v1646
        %v1685 = vpop.f32.mrb[0].mxu0
        %v1686 = vadd.f32 0.0, %v1685
        %v1687 = vpop.f32.mrb[0].mxu0
        %v1688 = vpop.f32.mrb[0].mxu0
        %v1689 = vpop.f32.mrb[0].mxu0
        %1690 = vdwg.mxu0
        %1692 = vrot.lane.b32.xlu0 %v1410, 32
        %v1693 = vpop.permute.xlu0 %1692
        %1696 = vrot.lane.b32.xlu0 %v1548, 64
        %v1697 = vpop.permute.xlu0 %1696
        %1700 = vrot.lane.b32.xlu0 %v1686, 96
        %v1701 = vpop.permute.xlu0 %1700
        %v1703 = vsel %vm1139, %v1271, %v1693
        %vm1704 = vcmask 523264
        %v1705 = vsel %vm1704, %v1703, %v1697
        %vm1706 = vcmask 785408
        %v1707 = vsel %vm1706, %v1705, %v1701
        %v1708 = vpack.c.bf16 %v1707, %v1707
        %v1709 = vld [vmem:[%s705] sm:$0xf]
        %v1710 = vld [vmem:[%s705 + $0x4] sm:$0xf]
        %v1711 = vld [vmem:[%s705 + $0x8] sm:$0xf]
        %v1712 = vld [vmem:[%s705 + $0xc] sm:$0xf]
        %v1713 = vld [vmem:[%s705 + $0x10] sm:$0xf]
        %v1714 = vld [vmem:[%s705 + $0x14] sm:$0xf]
        %v1715 = vld [vmem:[%s705 + $0x18] sm:$0xf]
        %v1716 = vld [vmem:[%s705 + $0x1c] sm:$0xf]
        %v1717 = vld [vmem:[%s705 + $0x20] sm:$0xf]
        %v1718 = vld [vmem:[%s705 + $0x24] sm:$0xf]
        %v1719 = vld [vmem:[%s705 + $0x28] sm:$0xf]
        %v1720 = vld [vmem:[%s705 + $0x2c] sm:$0xf]
        %v1721 = vld [vmem:[%s705 + $0x30] sm:$0xf]
        %v1722 = vld [vmem:[%s705 + $0x34] sm:$0xf]
        %v1723 = vld [vmem:[%s705 + $0x38] sm:$0xf]
        %v1724 = vld [vmem:[%s705 + $0x3c] sm:$0xf]
        %v1725 = vld [vmem:[%s827] sm:$0x1]
        %v1727 = vlaneseq
        %v1728 = vshrl.u32 %v1727, 7
        %v1729 = vsub.s32 0, %v1728
        %v1730 = vrot.slane %v1725, %v1729
        %v1748 = vunpack.c.l.b16 %v1709
        %v1749 = vunpack.c.l.b16 %v1710
        %v1750 = vunpack.c.l.b16 %v1711
        %v1751 = vunpack.c.l.b16 %v1712
        %v1752 = vunpack.c.l.b16 %v1713
        %v1753 = vunpack.c.l.b16 %v1714
        %v1754 = vunpack.c.l.b16 %v1715
        %v1755 = vunpack.c.l.b16 %v1716
        %v1756 = vunpack.c.l.b16 %v1717
        %v1757 = vunpack.c.l.b16 %v1718
        %v1758 = vunpack.c.l.b16 %v1719
        %v1759 = vunpack.c.l.b16 %v1720
        %v1760 = vunpack.c.l.b16 %v1721
        %v1761 = vunpack.c.l.b16 %v1722
        %v1762 = vunpack.c.l.b16 %v1723
        %v1763 = vunpack.c.l.b16 %v1724
        %v1764 = vpack.c.b16 %v1749, %v1748
        %v1765 = vpack.c.b16 %v1751, %v1750
        %v1766 = vpack.c.b16 %v1753, %v1752
        %v1767 = vpack.c.b16 %v1755, %v1754
        %v1768 = vpack.c.b16 %v1757, %v1756
        %v1769 = vpack.c.b16 %v1759, %v1758
        %v1770 = vpack.c.b16 %v1761, %v1760
        %v1771 = vpack.c.b16 %v1763, %v1762
        %1780 = vmatprep.subr.bf16.mxu0 0
        %1781 = vmatpush1.bf16.msra.mxu0 %v1764
        %1782 = vmatprep.subr.bf16.mxu0 0
        %1783 = vmatpush1.bf16.msra.mxu0 %v1765
        %1784 = vmatprep.subr.bf16.mxu0 0
        %1785 = vmatpush1.bf16.msra.mxu0 %v1766
        %1786 = vmatprep.subr.bf16.mxu0 0
        %1787 = vmatpush1.bf16.msra.mxu0 %v1767
        %1788 = vmatprep.subr.bf16.mxu0 0
        %1789 = vmatpush1.bf16.msra.mxu0 %v1768
        %1790 = vmatprep.subr.bf16.mxu0 0
        %1791 = vmatpush1.bf16.msra.mxu0 %v1769
        %1792 = vmatprep.subr.bf16.mxu0 0
        %1793 = vmatpush1.bf16.msra.mxu0 %v1770
        %1794 = vmatprep.subr.bf16.mxu0 0
        %1795 = vmatpush1.bf16.msra.mxu0 %v1771
        %1796 = vmatprep.subr.bf16.mxu0 0
        %1797 = vmatpush1.bf16.msra.mxu0 0
        %1798 = vmatprep.subr.bf16.mxu0 0
        %1799 = vmatpush1.bf16.msra.mxu0 0
        %1800 = vmatprep.subr.bf16.mxu0 0
        %1801 = vmatpush1.bf16.msra.mxu0 0
        %1802 = vmatprep.subr.bf16.mxu0 0
        %1803 = vmatpush1.bf16.msra.mxu0 0
        %1804 = vmatprep.subr.bf16.mxu0 0
        %1805 = vmatpush1.bf16.msra.mxu0 0
        %1806 = vmatprep.subr.bf16.mxu0 0
        %1807 = vmatpush1.bf16.msra.mxu0 0
        %1808 = vmatprep.subr.bf16.mxu0 0
        %1809 = vmatpush1.bf16.msra.mxu0 0
        %1810 = vmatprep.subr.bf16.mxu0 0
        %1811 = vmatpush1.bf16.msra.mxu0 0
        %1812 = vmatprep.mubr.bf16.mxu0 0
        %1813 = vmatmul.mubr.bf16.gmra.mrb[0].mxu0 %v1708
        %v1814 = vpop.f32.mrb[0].mxu0
        %v1815 = vadd.f32 %v1730, %v1814
        %v1816 = vpop.f32.mrb[0].mxu0
        %v1817 = vpop.f32.mrb[0].mxu0
        %v1818 = vpop.f32.mrb[0].mxu0
        %1819 = vdwg.mxu0
        %v1820 = vadd.f32 %v848, %v1815
        %1821 = vadd.xlane.f32.xlu0 %v1820
        %v1822 = vpop.xlane.xlu0 %1821
        %v1823 = vmul.f32 %v1822, %v852
        %v1824 = vsub.f32 %v1820, %v1823
        %v1825 = vmul.f32 %v1824, %v1824
        %1826 = vadd.xlane.f32.xlu0 %v1825
        %v1827 = vpop.xlane.xlu0 %1826
        %v1828 = vmul.f32 %v1827, %v852
        %v1829 = vadd.f32 %v1828, 1e-05
        %v1830 = vrsqrt.pop %v1829
        %v1831 = vmul.f32 %v1824, %v1830
        %v1832 = vld [vmem:[%s830] sm:$0x1]
        %v1834 = vlaneseq
        %v1835 = vshrl.u32 %v1834, 7
        %v1836 = vsub.s32 0, %v1835
        %v1837 = vrot.slane %v1832, %v1836
        %v1839 = vmul.f32 %v1831, %v1837
        %v1840 = vld [vmem:[%s833] sm:$0x1]
        %v1842 = vlaneseq
        %v1843 = vshrl.u32 %v1842, 7
        %v1844 = vsub.s32 0, %v1843
        %v1845 = vrot.slane %v1840, %v1844
        %v1847 = vadd.f32 %v1839, %v1845
        %v1848 = vpack.c.bf16 %v1847, %v1847
        %v1849 = vld [vmem:[%s714] sm:$0xff]
        %v1850 = vld [vmem:[%s714 + $0x8] sm:$0xff]
        %v1851 = vld [vmem:[%s714 + $0x10] sm:$0xff]
        %v1852 = vld [vmem:[%s714 + $0x18] sm:$0xff]
        %v1853 = vld [vmem:[%s714 + $0x20] sm:$0xff]
        %v1854 = vld [vmem:[%s714 + $0x28] sm:$0xff]
        %v1855 = vld [vmem:[%s714 + $0x30] sm:$0xff]
        %v1856 = vld [vmem:[%s714 + $0x38] sm:$0xff]
        %v1857 = vld [vmem:[%s714 + $0x40] sm:$0xff]
        %v1858 = vld [vmem:[%s714 + $0x48] sm:$0xff]
        %v1859 = vld [vmem:[%s714 + $0x50] sm:$0xff]
        %v1860 = vld [vmem:[%s714 + $0x58] sm:$0xff]
        %v1861 = vld [vmem:[%s714 + $0x60] sm:$0xff]
        %v1862 = vld [vmem:[%s714 + $0x68] sm:$0xff]
        %v1863 = vld [vmem:[%s714 + $0x70] sm:$0xff]
        %v1864 = vld [vmem:[%s714 + $0x78] sm:$0xff]
        %v1865 = vld [vmem:[%s714 + $0x80] sm:$0xff]
        %v1866 = vld [vmem:[%s714 + $0x88] sm:$0xff]
        %v1867 = vld [vmem:[%s714 + $0x90] sm:$0xff]
        %v1868 = vld [vmem:[%s714 + $0x98] sm:$0xff]
        %v1869 = vld [vmem:[%s714 + $0xa0] sm:$0xff]
        %v1870 = vld [vmem:[%s714 + $0xa8] sm:$0xff]
        %v1871 = vld [vmem:[%s714 + $0xb0] sm:$0xff]
        %v1872 = vld [vmem:[%s714 + $0xb8] sm:$0xff]
        %v1873 = vld [vmem:[%s714 + $0xc0] sm:$0xff]
        %v1874 = vld [vmem:[%s714 + $0xc8] sm:$0xff]
        %v1875 = vld [vmem:[%s714 + $0xd0] sm:$0xff]
        %v1876 = vld [vmem:[%s714 + $0xd8] sm:$0xff]
        %v1877 = vld [vmem:[%s714 + $0xe0] sm:$0xff]
        %v1878 = vld [vmem:[%s714 + $0xe8] sm:$0xff]
        %v1879 = vld [vmem:[%s714 + $0xf0] sm:$0xff]
        %v1880 = vld [vmem:[%s714 + $0xf8] sm:$0xff]
        %v1881 = vld [vmem:[%s837] sm:$0xf]
        %v1883 = vlaneseq
        %v1884 = vshrl.u32 %v1883, 7
        %v1885 = vsub.s32 0, %v1884
        %v1886 = vrot.slane %v1881, %v1885
        %v1887 = vlaneseq
        %v1888 = vshrl.u32 %v1887, 7
        %v1889 = vsub.s32 1, %v1888
        %v1890 = vrot.slane %v1881, %v1889
        %v1891 = vlaneseq
        %v1892 = vshrl.u32 %v1891, 7
        %v1893 = vsub.s32 2, %v1892
        %v1894 = vrot.slane %v1881, %v1893
        %v1895 = vlaneseq
        %v1896 = vshrl.u32 %v1895, 7
        %v1897 = vsub.s32 3, %v1896
        %v1898 = vrot.slane %v1881, %v1897
        %v1935 = vunpack.c.l.b16 %v1849
        %v1936 = vunpack.c.h.b16 %v1849
        %v1937 = vunpack.c.l.b16 %v1850
        %v1938 = vunpack.c.h.b16 %v1850
        %v1939 = vunpack.c.l.b16 %v1851
        %v1940 = vunpack.c.h.b16 %v1851
        %v1941 = vunpack.c.l.b16 %v1852
        %v1942 = vunpack.c.h.b16 %v1852
        %v1943 = vunpack.c.l.b16 %v1853
        %v1944 = vunpack.c.h.b16 %v1853
        %v1945 = vunpack.c.l.b16 %v1854
        %v1946 = vunpack.c.h.b16 %v1854
        %v1947 = vunpack.c.l.b16 %v1855
        %v1948 = vunpack.c.h.b16 %v1855
        %v1949 = vunpack.c.l.b16 %v1856
        %v1950 = vunpack.c.h.b16 %v1856
        %v1951 = vunpack.c.l.b16 %v1857
        %v1952 = vunpack.c.h.b16 %v1857
        %v1953 = vunpack.c.l.b16 %v1858
        %v1954 = vunpack.c.h.b16 %v1858
        %v1955 = vunpack.c.l.b16 %v1859
        %v1956 = vunpack.c.h.b16 %v1859
        %v1957 = vunpack.c.l.b16 %v1860
        %v1958 = vunpack.c.h.b16 %v1860
        %v1959 = vunpack.c.l.b16 %v1861
        %v1960 = vunpack.c.h.b16 %v1861
        %v1961 = vunpack.c.l.b16 %v1862
        %v1962 = vunpack.c.h.b16 %v1862
        %v1963 = vunpack.c.l.b16 %v1863
        %v1964 = vunpack.c.h.b16 %v1863
        %v1965 = vunpack.c.l.b16 %v1864
        %v1966 = vunpack.c.h.b16 %v1864
        %v1967 = vunpack.c.l.b16 %v1865
        %v1968 = vunpack.c.h.b16 %v1865
        %v1969 = vunpack.c.l.b16 %v1866
        %v1970 = vunpack.c.h.b16 %v1866
        %v1971 = vunpack.c.l.b16 %v1867
        %v1972 = vunpack.c.h.b16 %v1867
        %v1973 = vunpack.c.l.b16 %v1868
        %v1974 = vunpack.c.h.b16 %v1868
        %v1975 = vunpack.c.l.b16 %v1869
        %v1976 = vunpack.c.h.b16 %v1869
        %v1977 = vunpack.c.l.b16 %v1870
        %v1978 = vunpack.c.h.b16 %v1870
        %v1979 = vunpack.c.l.b16 %v1871
        %v1980 = vunpack.c.h.b16 %v1871
        %v1981 = vunpack.c.l.b16 %v1872
        %v1982 = vunpack.c.h.b16 %v1872
        %v1983 = vunpack.c.l.b16 %v1873
        %v1984 = vunpack.c.h.b16 %v1873
        %v1985 = vunpack.c.l.b16 %v1874
        %v1986 = vunpack.c.h.b16 %v1874
        %v1987 = vunpack.c.l.b16 %v1875
        %v1988 = vunpack.c.h.b16 %v1875
        %v1989 = vunpack.c.l.b16 %v1876
        %v1990 = vunpack.c.h.b16 %v1876
        %v1991 = vunpack.c.l.b16 %v1877
        %v1992 = vunpack.c.h.b16 %v1877
        %v1993 = vunpack.c.l.b16 %v1878
        %v1994 = vunpack.c.h.b16 %v1878
        %v1995 = vunpack.c.l.b16 %v1879
        %v1996 = vunpack.c.h.b16 %v1879
        %v1997 = vunpack.c.l.b16 %v1880
        %v1998 = vunpack.c.h.b16 %v1880
        %v1999 = vpack.c.b16 %v1939, %v1935
        %v2000 = vpack.c.b16 %v1940, %v1936
        %v2001 = vpack.c.b16 %v1941, %v1937
        %v2002 = vpack.c.b16 %v1942, %v1938
        %v2003 = vpack.c.b16 %v1947, %v1943
        %v2004 = vpack.c.b16 %v1948, %v1944
        %v2005 = vpack.c.b16 %v1949, %v1945
        %v2006 = vpack.c.b16 %v1950, %v1946
        %v2007 = vpack.c.b16 %v1955, %v1951
        %v2008 = vpack.c.b16 %v1956, %v1952
        %v2009 = vpack.c.b16 %v1957, %v1953
        %v2010 = vpack.c.b16 %v1958, %v1954
        %v2011 = vpack.c.b16 %v1963, %v1959
        %v2012 = vpack.c.b16 %v1964, %v1960
        %v2013 = vpack.c.b16 %v1965, %v1961
        %v2014 = vpack.c.b16 %v1966, %v1962
        %v2015 = vpack.c.b16 %v1971, %v1967
        %v2016 = vpack.c.b16 %v1972, %v1968
        %v2017 = vpack.c.b16 %v1973, %v1969
        %v2018 = vpack.c.b16 %v1974, %v1970
        %v2019 = vpack.c.b16 %v1979, %v1975
        %v2020 = vpack.c.b16 %v1980, %v1976
        %v2021 = vpack.c.b16 %v1981, %v1977
        %v2022 = vpack.c.b16 %v1982, %v1978
        %v2023 = vpack.c.b16 %v1987, %v1983
        %v2024 = vpack.c.b16 %v1988, %v1984
        %v2025 = vpack.c.b16 %v1989, %v1985
        %v2026 = vpack.c.b16 %v1990, %v1986
        %v2027 = vpack.c.b16 %v1995, %v1991
        %v2028 = vpack.c.b16 %v1996, %v1992
        %v2029 = vpack.c.b16 %v1997, %v1993
        %v2030 = vpack.c.b16 %v1998, %v1994
        %2063 = vmatprep.subr.bf16.mxu0 %v2000
        %2064 = vmatpush1.bf16.msra.mxu0 %v1999
        %2065 = vmatprep.subr.bf16.mxu0 %v2004
        %2066 = vmatpush1.bf16.msra.mxu0 %v2003
        %2067 = vmatprep.subr.bf16.mxu0 %v2008
        %2068 = vmatpush1.bf16.msra.mxu0 %v2007
        %2069 = vmatprep.subr.bf16.mxu0 %v2012
        %2070 = vmatpush1.bf16.msra.mxu0 %v2011
        %2071 = vmatprep.subr.bf16.mxu0 %v2016
        %2072 = vmatpush1.bf16.msra.mxu0 %v2015
        %2073 = vmatprep.subr.bf16.mxu0 %v2020
        %2074 = vmatpush1.bf16.msra.mxu0 %v2019
        %2075 = vmatprep.subr.bf16.mxu0 %v2024
        %2076 = vmatpush1.bf16.msra.mxu0 %v2023
        %2077 = vmatprep.subr.bf16.mxu0 %v2028
        %2078 = vmatpush1.bf16.msra.mxu0 %v2027
        %2079 = vmatprep.subr.bf16.mxu0 0
        %2080 = vmatpush1.bf16.msra.mxu0 0
        %2081 = vmatprep.subr.bf16.mxu0 0
        %2082 = vmatpush1.bf16.msra.mxu0 0
        %2083 = vmatprep.subr.bf16.mxu0 0
        %2084 = vmatpush1.bf16.msra.mxu0 0
        %2085 = vmatprep.subr.bf16.mxu0 0
        %2086 = vmatpush1.bf16.msra.mxu0 0
        %2087 = vmatprep.subr.bf16.mxu0 0
        %2088 = vmatpush1.bf16.msra.mxu0 0
        %2089 = vmatprep.subr.bf16.mxu0 0
        %2090 = vmatpush1.bf16.msra.mxu0 0
        %2091 = vmatprep.subr.bf16.mxu0 0
        %2092 = vmatpush1.bf16.msra.mxu0 0
        %2093 = vmatprep.subr.bf16.mxu0 0
        %2094 = vmatpush1.bf16.msra.mxu0 0
        %2095 = vmatprep.mubr.bf16.mxu0 0
        %2096 = vmatmul.mubr.bf16.gmra.mrb[0].mxu0 %v1848
        %v2097 = vpop.f32.mrb[0].mxu0
        %v2098 = vadd.f32 %v1886, %v2097
        %v2099 = vpop.f32.mrb[0].mxu0
        %v2100 = vadd.f32 %v1890, %v2099
        %v2101 = vpop.f32.mrb[0].mxu0
        %v2102 = vpop.f32.mrb[0].mxu0
        %2103 = vdwg.mxu0
        %2104 = vmatprep.subr.bf16.mxu0 %v2002
        %2105 = vmatpush1.bf16.msra.mxu0 %v2001
        %2106 = vmatprep.subr.bf16.mxu0 %v2006
        %2107 = vmatpush1.bf16.msra.mxu0 %v2005
        %2108 = vmatprep.subr.bf16.mxu0 %v2010
        %2109 = vmatpush1.bf16.msra.mxu0 %v2009
        %2110 = vmatprep.subr.bf16.mxu0 %v2014
        %2111 = vmatpush1.bf16.msra.mxu0 %v2013
        %2112 = vmatprep.subr.bf16.mxu0 %v2018
        %2113 = vmatpush1.bf16.msra.mxu0 %v2017
        %2114 = vmatprep.subr.bf16.mxu0 %v2022
        %2115 = vmatpush1.bf16.msra.mxu0 %v2021
        %2116 = vmatprep.subr.bf16.mxu0 %v2026
        %2117 = vmatpush1.bf16.msra.mxu0 %v2025
        %2118 = vmatprep.subr.bf16.mxu0 %v2030
        %2119 = vmatpush1.bf16.msra.mxu0 %v2029
        %2120 = vmatprep.subr.bf16.mxu0 0
        %2121 = vmatpush1.bf16.msra.mxu0 0
        %2122 = vmatprep.subr.bf16.mxu0 0
        %2123 = vmatpush1.bf16.msra.mxu0 0
        %2124 = vmatprep.subr.bf16.mxu0 0
        %2125 = vmatpush1.bf16.msra.mxu0 0
        %2126 = vmatprep.subr.bf16.mxu0 0
        %2127 = vmatpush1.bf16.msra.mxu0 0
        %2128 = vmatprep.subr.bf16.mxu0 0
        %2129 = vmatpush1.bf16.msra.mxu0 0
        %2130 = vmatprep.subr.bf16.mxu0 0
        %2131 = vmatpush1.bf16.msra.mxu0 0
        %2132 = vmatprep.subr.bf16.mxu0 0
        %2133 = vmatpush1.bf16.msra.mxu0 0
        %2134 = vmatprep.subr.bf16.mxu0 0
        %2135 = vmatpush1.bf16.msra.mxu0 0
        %2136 = vmatprep.mubr.bf16.mxu0 0
        %2137 = vmatmul.mubr.bf16.gmra.mrb[0].mxu0 %v1848
        %v2138 = vpop.f32.mrb[0].mxu0
        %v2139 = vadd.f32 %v1894, %v2138
        %v2140 = vpop.f32.mrb[0].mxu0
        %v2141 = vadd.f32 %v1898, %v2140
        %v2142 = vpop.f32.mrb[0].mxu0
        %v2143 = vpop.f32.mrb[0].mxu0
        %2144 = vdwg.mxu0
        %v2145 = vmul.f32 %v2098, -1.702
        %v2146 = vmul.f32 %v2100, -1.702
        %v2147 = vmul.f32 %v2139, -1.702
        %v2148 = vmul.f32 %v2141, -1.702
        %v2149 = vmul.f32 %v2145, 1.442695
        %v2150 = vpow.pop %v2149
        %v2151 = vmul.f32 %v2146, 1.442695
        %v2152 = vpow.pop %v2151
        %v2153 = vmul.f32 %v2147, 1.442695
        %v2154 = vpow.pop %v2153
        %v2155 = vmul.f32 %v2148, 1.442695
        %v2156 = vpow.pop %v2155
        %v2157 = vadd.f32 %v2150, 1.0
        %v2158 = vadd.f32 %v2152, 1.0
        %v2159 = vadd.f32 %v2154, 1.0
        %v2160 = vadd.f32 %v2156, 1.0
        %v2161 = vrcp.pop %v2157
        %v2162 = vmul.f32 1.0, %v2161
        %v2163 = vrcp.pop %v2158
        %v2164 = vmul.f32 1.0, %v2163
        %v2165 = vrcp.pop %v2159
        %v2166 = vmul.f32 1.0, %v2165
        %v2167 = vrcp.pop %v2160
        %v2168 = vmul.f32 1.0, %v2167
        %v2169 = vmul.f32 %v2098, %v2162
        %v2170 = vmul.f32 %v2100, %v2164
        %v2171 = vmul.f32 %v2139, %v2166
        %v2172 = vmul.f32 %v2141, %v2168
        %v2173 = vpack.c.bf16 %v2169, %v2169
        %v2174 = vpack.c.bf16 %v2170, %v2170
        %v2175 = vpack.c.bf16 %v2171, %v2171
        %v2176 = vpack.c.bf16 %v2172, %v2172
        %v2177 = vld [vmem:[%s723] sm:$0xf]
        %v2178 = vld [vmem:[%s723 + $0x4] sm:$0xf]
        %v2179 = vld [vmem:[%s723 + $0x8] sm:$0xf]
        %v2180 = vld [vmem:[%s723 + $0xc] sm:$0xf]
        %v2181 = vld [vmem:[%s723 + $0x10] sm:$0xf]
        %v2182 = vld [vmem:[%s723 + $0x14] sm:$0xf]
        %v2183 = vld [vmem:[%s723 + $0x18] sm:$0xf]
        %v2184 = vld [vmem:[%s723 + $0x1c] sm:$0xf]
        %v2185 = vld [vmem:[%s723 + $0x20] sm:$0xf]
        %v2186 = vld [vmem:[%s723 + $0x24] sm:$0xf]
        %v2187 = vld [vmem:[%s723 + $0x28] sm:$0xf]
        %v2188 = vld [vmem:[%s723 + $0x2c] sm:$0xf]
        %v2189 = vld [vmem:[%s723 + $0x30] sm:$0xf]
        %v2190 = vld [vmem:[%s723 + $0x34] sm:$0xf]
        %v2191 = vld [vmem:[%s723 + $0x38] sm:$0xf]
        %v2192 = vld [vmem:[%s723 + $0x3c] sm:$0xf]
        %v2193 = vld [vmem:[%s723 + $0x40] sm:$0xf]
        %v2194 = vld [vmem:[%s723 + $0x44] sm:$0xf]
        %v2195 = vld [vmem:[%s723 + $0x48] sm:$0xf]
        %v2196 = vld [vmem:[%s723 + $0x4c] sm:$0xf]
        %v2197 = vld [vmem:[%s723 + $0x50] sm:$0xf]
        %v2198 = vld [vmem:[%s723 + $0x54] sm:$0xf]
        %v2199 = vld [vmem:[%s723 + $0x58] sm:$0xf]
        %v2200 = vld [vmem:[%s723 + $0x5c] sm:$0xf]
        %v2201 = vld [vmem:[%s723 + $0x60] sm:$0xf]
        %v2202 = vld [vmem:[%s723 + $0x64] sm:$0xf]
        %v2203 = vld [vmem:[%s723 + $0x68] sm:$0xf]
        %v2204 = vld [vmem:[%s723 + $0x6c] sm:$0xf]
        %v2205 = vld [vmem:[%s723 + $0x70] sm:$0xf]
        %v2206 = vld [vmem:[%s723 + $0x74] sm:$0xf]
        %v2207 = vld [vmem:[%s723 + $0x78] sm:$0xf]
        %v2208 = vld [vmem:[%s723 + $0x7c] sm:$0xf]
        %v2209 = vld [vmem:[%s723 + $0x80] sm:$0xf]
        %v2210 = vld [vmem:[%s723 + $0x84] sm:$0xf]
        %v2211 = vld [vmem:[%s723 + $0x88] sm:$0xf]
        %v2212 = vld [vmem:[%s723 + $0x8c] sm:$0xf]
        %v2213 = vld [vmem:[%s723 + $0x90] sm:$0xf]
        %v2214 = vld [vmem:[%s723 + $0x94] sm:$0xf]
        %v2215 = vld [vmem:[%s723 + $0x98] sm:$0xf]
        %v2216 = vld [vmem:[%s723 + $0x9c] sm:$0xf]
        %v2217 = vld [vmem:[%s723 + $0xa0] sm:$0xf]
        %v2218 = vld [vmem:[%s723 + $0xa4] sm:$0xf]
        %v2219 = vld [vmem:[%s723 + $0xa8] sm:$0xf]
        %v2220 = vld [vmem:[%s723 + $0xac] sm:$0xf]
        %v2221 = vld [vmem:[%s723 + $0xb0] sm:$0xf]
        %v2222 = vld [vmem:[%s723 + $0xb4] sm:$0xf]
        %v2223 = vld [vmem:[%s723 + $0xb8] sm:$0xf]
        %v2224 = vld [vmem:[%s723 + $0xbc] sm:$0xf]
        %v2225 = vld [vmem:[%s723 + $0xc0] sm:$0xf]
        %v2226 = vld [vmem:[%s723 + $0xc4] sm:$0xf]
        %v2227 = vld [vmem:[%s723 + $0xc8] sm:$0xf]
        %v2228 = vld [vmem:[%s723 + $0xcc] sm:$0xf]
        %v2229 = vld [vmem:[%s723 + $0xd0] sm:$0xf]
        %v2230 = vld [vmem:[%s723 + $0xd4] sm:$0xf]
        %v2231 = vld [vmem:[%s723 + $0xd8] sm:$0xf]
        %v2232 = vld [vmem:[%s723 + $0xdc] sm:$0xf]
        %v2233 = vld [vmem:[%s723 + $0xe0] sm:$0xf]
        %v2234 = vld [vmem:[%s723 + $0xe4] sm:$0xf]
        %v2235 = vld [vmem:[%s723 + $0xe8] sm:$0xf]
        %v2236 = vld [vmem:[%s723 + $0xec] sm:$0xf]
        %v2237 = vld [vmem:[%s723 + $0xf0] sm:$0xf]
        %v2238 = vld [vmem:[%s723 + $0xf4] sm:$0xf]
        %v2239 = vld [vmem:[%s723 + $0xf8] sm:$0xf]
        %v2240 = vld [vmem:[%s723 + $0xfc] sm:$0xf]
        %v2241 = vld [vmem:[%s840] sm:$0x1]
        %v2243 = vlaneseq
        %v2244 = vshrl.u32 %v2243, 7
        %v2245 = vsub.s32 0, %v2244
        %v2246 = vrot.slane %v2241, %v2245
        %v2312 = vunpack.c.l.b16 %v2177
        %v2313 = vunpack.c.l.b16 %v2178
        %v2314 = vunpack.c.l.b16 %v2179
        %v2315 = vunpack.c.l.b16 %v2180
        %v2316 = vunpack.c.l.b16 %v2181
        %v2317 = vunpack.c.l.b16 %v2182
        %v2318 = vunpack.c.l.b16 %v2183
        %v2319 = vunpack.c.l.b16 %v2184
        %v2320 = vunpack.c.l.b16 %v2185
        %v2321 = vunpack.c.l.b16 %v2186
        %v2322 = vunpack.c.l.b16 %v2187
        %v2323 = vunpack.c.l.b16 %v2188
        %v2324 = vunpack.c.l.b16 %v2189
        %v2325 = vunpack.c.l.b16 %v2190
        %v2326 = vunpack.c.l.b16 %v2191
        %v2327 = vunpack.c.l.b16 %v2192
        %v2328 = vunpack.c.l.b16 %v2193
        %v2329 = vunpack.c.l.b16 %v2194
        %v2330 = vunpack.c.l.b16 %v2195
        %v2331 = vunpack.c.l.b16 %v2196
        %v2332 = vunpack.c.l.b16 %v2197
        %v2333 = vunpack.c.l.b16 %v2198
        %v2334 = vunpack.c.l.b16 %v2199
        %v2335 = vunpack.c.l.b16 %v2200
        %v2336 = vunpack.c.l.b16 %v2201
        %v2337 = vunpack.c.l.b16 %v2202
        %v2338 = vunpack.c.l.b16 %v2203
        %v2339 = vunpack.c.l.b16 %v2204
        %v2340 = vunpack.c.l.b16 %v2205
        %v2341 = vunpack.c.l.b16 %v2206
        %v2342 = vunpack.c.l.b16 %v2207
        %v2343 = vunpack.c.l.b16 %v2208
        %v2344 = vunpack.c.l.b16 %v2209
        %v2345 = vunpack.c.l.b16 %v2210
        %v2346 = vunpack.c.l.b16 %v2211
        %v2347 = vunpack.c.l.b16 %v2212
        %v2348 = vunpack.c.l.b16 %v2213
        %v2349 = vunpack.c.l.b16 %v2214
        %v2350 = vunpack.c.l.b16 %v2215
        %v2351 = vunpack.c.l.b16 %v2216
        %v2352 = vunpack.c.l.b16 %v2217
        %v2353 = vunpack.c.l.b16 %v2218
        %v2354 = vunpack.c.l.b16 %v2219
        %v2355 = vunpack.c.l.b16 %v2220
        %v2356 = vunpack.c.l.b16 %v2221
        %v2357 = vunpack.c.l.b16 %v2222
        %v2358 = vunpack.c.l.b16 %v2223
        %v2359 = vunpack.c.l.b16 %v2224
        %v2360 = vunpack.c.l.b16 %v2225
        %v2361 = vunpack.c.l.b16 %v2226
        %v2362 = vunpack.c.l.b16 %v2227
        %v2363 = vunpack.c.l.b16 %v2228
        %v2364 = vunpack.c.l.b16 %v2229
        %v2365 = vunpack.c.l.b16 %v2230
        %v2366 = vunpack.c.l.b16 %v2231
        %v2367 = vunpack.c.l.b16 %v2232
        %v2368 = vunpack.c.l.b16 %v2233
        %v2369 = vunpack.c.l.b16 %v2234
        %v2370 = vunpack.c.l.b16 %v2235
        %v2371 = vunpack.c.l.b16 %v2236
        %v2372 = vunpack.c.l.b16 %v2237
        %v2373 = vunpack.c.l.b16 %v2238
        %v2374 = vunpack.c.l.b16 %v2239
        %v2375 = vunpack.c.l.b16 %v2240
        %v2376 = vpack.c.b16 %v2313, %v2312
        %v2377 = vpack.c.b16 %v2315, %v2314
        %v2378 = vpack.c.b16 %v2317, %v2316
        %v2379 = vpack.c.b16 %v2319, %v2318
        %v2380 = vpack.c.b16 %v2321, %v2320
        %v2381 = vpack.c.b16 %v2323, %v2322
        %v2382 = vpack.c.b16 %v2325, %v2324
        %v2383 = vpack.c.b16 %v2327, %v2326
        %v2384 = vpack.c.b16 %v2329, %v2328
        %v2385 = vpack.c.b16 %v2331, %v2330
        %v2386 = vpack.c.b16 %v2333, %v2332
        %v2387 = vpack.c.b16 %v2335, %v2334
        %v2388 = vpack.c.b16 %v2337, %v2336
        %v2389 = vpack.c.b16 %v2339, %v2338
        %v2390 = vpack.c.b16 %v2341, %v2340
        %v2391 = vpack.c.b16 %v2343, %v2342
        %v2392 = vpack.c.b16 %v2345, %v2344
        %v2393 = vpack.c.b16 %v2347, %v2346
        %v2394 = vpack.c.b16 %v2349, %v2348
        %v2395 = vpack.c.b16 %v2351, %v2350
        %v2396 = vpack.c.b16 %v2353, %v2352
        %v2397 = vpack.c.b16 %v2355, %v2354
        %v2398 = vpack.c.b16 %v2357, %v2356
        %v2399 = vpack.c.b16 %v2359, %v2358
        %v2400 = vpack.c.b16 %v2361, %v2360
        %v2401 = vpack.c.b16 %v2363, %v2362
        %v2402 = vpack.c.b16 %v2365, %v2364
        %v2403 = vpack.c.b16 %v2367, %v2366
        %v2404 = vpack.c.b16 %v2369, %v2368
        %v2405 = vpack.c.b16 %v2371, %v2370
        %v2406 = vpack.c.b16 %v2373, %v2372
        %v2407 = vpack.c.b16 %v2375, %v2374
        %2440 = vmatprep.subr.bf16.mxu0 0
        %2441 = vmatpush1.bf16.msra.mxu0 %v2376
        %2442 = vmatprep.subr.bf16.mxu0 0
        %2443 = vmatpush1.bf16.msra.mxu0 %v2377
        %2444 = vmatprep.subr.bf16.mxu0 0
        %2445 = vmatpush1.bf16.msra.mxu0 %v2378
        %2446 = vmatprep.subr.bf16.mxu0 0
        %2447 = vmatpush1.bf16.msra.mxu0 %v2379
        %2448 = vmatprep.subr.bf16.mxu0 0
        %2449 = vmatpush1.bf16.msra.mxu0 %v2380
        %2450 = vmatprep.subr.bf16.mxu0 0
        %2451 = vmatpush1.bf16.msra.mxu0 %v2381
        %2452 = vmatprep.subr.bf16.mxu0 0
        %2453 = vmatpush1.bf16.msra.mxu0 %v2382
        %2454 = vmatprep.subr.bf16.mxu0 0
        %2455 = vmatpush1.bf16.msra.mxu0 %v2383
        %2456 = vmatprep.subr.bf16.mxu0 0
        %2457 = vmatpush1.bf16.msra.mxu0 %v2384
        %2458 = vmatprep.subr.bf16.mxu0 0
        %2459 = vmatpush1.bf16.msra.mxu0 %v2385
        %2460 = vmatprep.subr.bf16.mxu0 0
        %2461 = vmatpush1.bf16.msra.mxu0 %v2386
        %2462 = vmatprep.subr.bf16.mxu0 0
        %2463 = vmatpush1.bf16.msra.mxu0 %v2387
        %2464 = vmatprep.subr.bf16.mxu0 0
        %2465 = vmatpush1.bf16.msra.mxu0 %v2388
        %2466 = vmatprep.subr.bf16.mxu0 0
        %2467 = vmatpush1.bf16.msra.mxu0 %v2389
        %2468 = vmatprep.subr.bf16.mxu0 0
        %2469 = vmatpush1.bf16.msra.mxu0 %v2390
        %2470 = vmatprep.subr.bf16.mxu0 0
        %2471 = vmatpush1.bf16.msra.mxu0 %v2391
        %2472 = vmatprep.mubr.bf16.mxu0 %v2174
        %2473 = vmatmul.mubr.bf16.gmra.mrb[0].mxu0 %v2173
        %v2474 = vpop.f32.mrb[0].mxu0
        %v2475 = vadd.f32 %v2246, %v2474
        %v2476 = vpop.f32.mrb[0].mxu0
        %v2477 = vpop.f32.mrb[0].mxu0
        %v2478 = vpop.f32.mrb[0].mxu0
        %2479 = vdwg.mxu0
        %2480 = vmatprep.subr.bf16.mxu0 0
        %2481 = vmatpush1.bf16.msra.mxu0 %v2392
        %2482 = vmatprep.subr.bf16.mxu0 0
        %2483 = vmatpush1.bf16.msra.mxu0 %v2393
        %2484 = vmatprep.subr.bf16.mxu0 0
        %2485 = vmatpush1.bf16.msra.mxu0 %v2394
        %2486 = vmatprep.subr.bf16.mxu0 0
        %2487 = vmatpush1.bf16.msra.mxu0 %v2395
        %2488 = vmatprep.subr.bf16.mxu0 0
        %2489 = vmatpush1.bf16.msra.mxu0 %v2396
        %2490 = vmatprep.subr.bf16.mxu0 0
        %2491 = vmatpush1.bf16.msra.mxu0 %v2397
        %2492 = vmatprep.subr.bf16.mxu0 0
        %2493 = vmatpush1.bf16.msra.mxu0 %v2398
        %2494 = vmatprep.subr.bf16.mxu0 0
        %2495 = vmatpush1.bf16.msra.mxu0 %v2399
        %2496 = vmatprep.subr.bf16.mxu0 0
        %2497 = vmatpush1.bf16.msra.mxu0 %v2400
        %2498 = vmatprep.subr.bf16.mxu0 0
        %2499 = vmatpush1.bf16.msra.mxu0 %v2401
        %2500 = vmatprep.subr.bf16.mxu0 0
        %2501 = vmatpush1.bf16.msra.mxu0 %v2402
        %2502 = vmatprep.subr.bf16.mxu0 0
        %2503 = vmatpush1.bf16.msra.mxu0 %v2403
        %2504 = vmatprep.subr.bf16.mxu0 0
        %2505 = vmatpush1.bf16.msra.mxu0 %v2404
        %2506 = vmatprep.subr.bf16.mxu0 0
        %2507 = vmatpush1.bf16.msra.mxu0 %v2405
        %2508 = vmatprep.subr.bf16.mxu0 0
        %2509 = vmatpush1.bf16.msra.mxu0 %v2406
        %2510 = vmatprep.subr.bf16.mxu0 0
        %2511 = vmatpush1.bf16.msra.mxu0 %v2407
        %2512 = vmatprep.mubr.bf16.mxu0 %v2176
        %2513 = vmatmul.mubr.bf16.gmra.mrb[0].mxu0 %v2175
        %v2514 = vpop.f32.mrb[0].mxu0
        %v2515 = vadd.f32 %v2475, %v2514
        %v2516 = vpop.f32.mrb[0].mxu0
        %v2517 = vpop.f32.mrb[0].mxu0
        %v2518 = vpop.f32.mrb[0].mxu0
        %2519 = vdwg.mxu0
        %v2520 = vadd.f32 %v1820, %v2515
        %2521 = vst [vmem:[#allocation2] sm:$0xff] %v2520
        %p2522 = scmp.eq.s32.totalorder %s48, 1
        // Predicated region
        $region113: #{tpu_custom_call.1} parent=75 // pred_check
          %p2523 = pneg %p2522
        $region114: #{tpu_custom_call.1} parent=75 // pred_check_branch
          %2525 = sbr.rel (%p2523) target = $region116
        $region115: #{tpu_custom_call.1} parent=75 // pred_region
          %2526 = vst [vmem:[%s820] sm:$0xff] %v2520
        $region116: #{tpu_custom_call.1} parent=75 // pred_fallthru
          _
        %s2527 = sand.u32 %s427, 1
        %s2528 = scalar_lea.sflag [#allocation5], %s2527
        %s2529 = sand.u32 %s427, 1
        %s2530 = smul.addr %s2529, 8
        %s2531 = scalar_lea.vmem [#allocation17], %s2530
        // Predicated region
        $region117: #{tpu_custom_call.1} parent=75 // pred_check
          %p2532 = pneg %p437
        $region118: #{tpu_custom_call.1} parent=75 // pred_check_branch
          %2534 = sbr.rel (%p2532) target = $region120
        $region119: #{tpu_custom_call.1} parent=75 // pred_region
          %s2536 = ssub.s32 128, 128
          %2537 = vsyncadd %s2528, %s2536
          %s2538 = smul.addr %s47, 128
          %s2539 = scalar_lea.hbm %s14, %s2538
          %s2541 = sshll.u32 %s2531, 4
          %s2542 = int_to_ptr.vmem [resolvable:$true] %s2541
          %2544 = dma.vmem_to_hbm [thread:$0]  %s2542, 128, %s2539, %s2528
        $region120: #{tpu_custom_call.1} parent=75 // pred_fallthru
          _
      $region76: #{tpu_custom_call.1} parent=5 // pred_fallthru
        _
      %p2545 = scmp.le.s32.totalorder 2, %s38
      // Predicated region
      $region121: #{tpu_custom_call.1} parent=5 // pred_check
        %p2546 = pneg %p2545
      $region122: #{tpu_custom_call.1} parent=5 // pred_check_branch
        %2548 = sbr.rel (%p2546) target = $region124
      $region123: #{tpu_custom_call.1} parent=5 // pred_region
        %s2549 = ssub.s32 %s38, 2
        // Predicated region
        $region125: #{tpu_custom_call.1} parent=123 // pred_check
          %p2550 = pneg %p443
        $region126: #{tpu_custom_call.1} parent=123 // pred_check_branch
          %2552 = sbr.rel (%p2550) target = $region128
        $region127: #{tpu_custom_call.1} parent=123 // pred_region
          %s2553 = sand.u32 %s428, 1
          %s2554 = scalar_lea.sflag [#allocation5], %s2553
          %s2555 = sand.u32 %s428, 1
          %s2556 = smul.addr %s2555, 8
          %s2557 = scalar_lea.vmem [#allocation17], %s2556
          %2558 = dma.done %s2554, 128
        $region128: #{tpu_custom_call.1} parent=123 // pred_fallthru
          _
      $region124: #{tpu_custom_call.1} parent=5 // pred_fallthru
        _
    $region6: #{tpu_custom_call.1} parent=1 // loop_footer
      %s42 = sadd.s32 1, %s38
    $region7: #{tpu_custom_call.1} parent=1 // loop_footer_branch
      %37 = sbr.rel target = $region3
    $region8: #{tpu_custom_call.1} parent=1 // loop_exit
      _
    %2559 = vsyncpa [#allocation4], 1
    %s2560 = scalar_lea.sflag [#allocation4], 1
    %2561 = vsyncpa %s2560, 1
    %2562 = vsyncpa [#allocation7], 1
    %s2563 = scalar_lea.sflag [#allocation7], 1
    %2564 = vsyncpa %s2563, 1
    %2565 = vsyncpa [#allocation10], 1
    %s2566 = scalar_lea.sflag [#allocation10], 1
    %2567 = vsyncpa %s2566, 1
    %2568 = vsyncpa [#allocation13], 1
    %s2569 = scalar_lea.sflag [#allocation13], 1
    %2570 = vsyncpa %s2569, 1
    %2571 = vsyncpa [#allocation16], 1
    %s2572 = scalar_lea.sflag [#allocation16], 1
    %2573 = vsyncpa %s2572, 1
    %2574 = vsyncpa [#allocation5], 1
    %s2575 = scalar_lea.sflag [#allocation5], 1
    %2576 = vsyncpa %s2575, 1

</llo_original>
